<compile_context>
chip_gen: v7x
topology: tpu7x:2x2x1
jax: 0.10.0
libtpu: 0.0.40
codegen_flags: <defaults>
</compile_context>

<pallas_src>
import functools
import math

import jax
import jax.numpy as jnp
from jax.experimental import pallas as pl
from jax.experimental.pallas import tpu as pltpu

WINDOW_SIZE = 11
SIGMA = 1.5
K1, K2 = 0.01, 0.03
VALUE_RANGE = 1.0
C1 = (K1 * VALUE_RANGE) ** 2
C2 = (K2 * VALUE_RANGE) ** 2

NUM_STATS = 5  # x, y, x*x, y*y, x*y


def _gaussian_taps(window_size=WINDOW_SIZE, sigma=SIGMA):
    """1-D Gaussian taps as Python floats (compile-time constants)."""
    c = (window_size - 1) / 2.0
    vals = [math.exp(-((i - c) ** 2) / (2.0 * sigma * sigma)) for i in range(window_size)]
    tot = sum(vals)
    return [v / tot for v in vals]


def _col_conv_matrix(w, window_size, taps):
    """(W, Wo) matrix so that  X @ CW  == valid 1-D Gaussian conv along W."""
    wo = w - window_size + 1
    g = jnp.array(taps, jnp.float32)
    k = jnp.arange(window_size)[:, None]
    j = jnp.arange(wo)[None, :]
    cw = jnp.zeros((w, wo), jnp.float32)
    return cw.at[k + j, j].set(jnp.broadcast_to(g[:, None], (window_size, wo)))


def _valid_row_mask(tc, h, window_size):
    """(TC*H, 1) float mask: 1 where the 11-row window stays inside a channel."""
    ho = h - window_size + 1
    m = (jnp.arange(tc * h) % h) < ho
    return m.astype(jnp.float32)[:, None]


def _vmem_limit_bytes():
    """Generation-aware scoped-VMEM limit (<= 3/4 of physical VMEM)."""
    try:
        cap = int(pltpu.get_tpu_info().vmem_capacity_bytes)
    except Exception:
        cap = 64 << 20  # conservative fallback (v7x-sized)
    return max(min(cap * 3 // 4, cap - (8 << 20)), 16 << 20)


def _pick_channel_block(b, h, w, in_itemsize, window_size, budget_bytes):
    """Largest channel block TC (divisor of b) whose per-step working set fits
    the VMEM budget; prefers leaving >= 2 grid blocks so the ("parallel",)
    grid axis can span both TensorCores on v7x."""
    wo = w - window_size + 1

    def est(tc):
        rows = tc * h                            # sublane rows of one image block
        srows = NUM_STATS * rows + window_size - 1
        e = 2 * 2 * rows * w * in_itemsize       # x, y input blocks (double-buffered)
        e += 2 * w * wo * 4                      # CW (double-buffered although constant)
        e += 2 * rows * 128 * 4                  # row-validity mask (lane-padded)
        e += 2 * rows * w * 4                    # normalized x, y (f32)
        e += srows * w * 4                       # stacked stats S
        e += srows * wo * 4                      # column-conv output T
        e += 2 * NUM_STATS * rows * wo * 4       # row-conv accumulator + shifted slice
        e += 8 * rows * wo * 4                   # epilogue temporaries
        return int(e * 1.25)                     # slack for Mosaic scratch / padding

    fits = [tc for tc in range(1, b + 1) if b % tc == 0 and est(tc) <= budget_bytes]
    if not fits:
        # TODO(synk): tile H inside the block instead of failing for huge images.
        raise ValueError(
            f"SSIM Pallas kernel: a single {h}x{w} channel does not fit the "
            f"VMEM budget of {budget_bytes} bytes; H-tiling is not implemented.")
    multi = [tc for tc in fits if b // tc >= 2]
    return max(multi) if multi else max(fits)


def _ssim_kernel(x_ref, y_ref, cw_ref, mask_ref, stats_ref, o_ref, *, taps):
    """One grid step = TC channels stacked on the sublane axis: (TC*H, W)."""
    f32 = jnp.float32
    # Cast after the VMEM load; global min-max normalization constants in SMEM.
    x = (x_ref[0].astype(f32) - stats_ref[0]) * stats_ref[1]        # (TC*H, W)
    y = (y_ref[0].astype(f32) - stats_ref[2]) * stats_ref[3]

    rows = x.shape[0]                       # TC * H
    ntaps = len(taps)

    # 5 filter operands stacked along sublanes, plus (ntaps-1) zero rows so the
    # shifted row-conv slices below never run out of bounds.
    pad = jnp.zeros((ntaps - 1, x.shape[1]), f32)
    s = jnp.concatenate([x, y, x * x, y * y, x * y, pad], axis=0)   # (5*TC*H+10, W)

    # Column (W) convolution: ONE shared (W, Wo) matmul on the MXU — no kron.
    t = jnp.dot(s, cw_ref[...], preferred_element_type=f32)         # (5*TC*H+10, Wo)

    # Row (H) convolution: 11 shifted FMAs along sublanes — no kron'd CH matmul.
    n = NUM_STATS * rows
    m = taps[0] * t[:n]
    for k in range(1, ntaps):
        m = m + taps[k] * t[k:k + n]                                 # (5*TC*H, Wo)

    mu_x, mu_y = m[:rows], m[rows:2 * rows]
    e_xx = m[2 * rows:3 * rows]
    e_yy = m[3 * rows:4 * rows]
    e_xy = m[4 * rows:]

    mu_xx = mu_x * mu_x
    mu_yy = mu_y * mu_y
    mu_xy = mu_x * mu_y
    s_xx = e_xx - mu_xx
    s_yy = e_yy - mu_yy
    s_xy = e_xy - mu_xy

    # Single exact reciprocal instead of two divisions.
    num = (2.0 * s_xy + C2) * (2.0 * mu_xy + C1)
    den = (s_xx + s_yy + C2) * (mu_xx + mu_yy + C1)
    ss = num * pl.reciprocal(den)                                    # (TC*H, Wo)

    # Rows whose 11-tap window crossed a channel/stat boundary are invalid;
    # select (not multiply) so any inf there cannot poison the sum.
    valid = mask_ref[...] > 0.0                                      # (TC*H, 1)
    o_ref[...] = jnp.sum(jnp.where(valid, ss, 0.0)).reshape(1, 1, 1)


@functools.partial(jax.jit, static_argnames=("window_size",))
def ssim_pallas(img1, img2, window_size=WINDOW_SIZE):
    """Equivalent of SSIM(window_size=11).forward(img1, img2) -> scalar."""
    # Global min-max stats over the whole tensors (matches the torch module,
    # which normalizes before calling piqa's SSIM).  This inherently needs a
    # full-image reduction before any block can be processed, so it stays as
    # two fused jnp reductions in the wrapper.
    x_min = jnp.min(img1).astype(jnp.float32)
    x_max = jnp.max(img1).astype(jnp.float32)
    y_min = jnp.min(img2).astype(jnp.float32)
    y_max = jnp.max(img2).astype(jnp.float32)
    stats = jnp.stack([x_min, 1.0 / (x_max - x_min + 1e-8),
                       y_min, 1.0 / (y_max - y_min + 1e-8)]).astype(jnp.float32)

    if img1.ndim == 5:
        # 5D (B, 1, D, H, W): squeeze the channel dim, treat depth as channels.
        img1 = jnp.squeeze(img1, axis=1)
        img2 = jnp.squeeze(img2, axis=1)

    n, c, h, w = img1.shape
    b = n * c
    ho, wo = h - window_size + 1, w - window_size + 1
    if ho <= 0 or wo <= 0:
        raise ValueError("image smaller than the SSIM window")

    vmem_limit = _vmem_limit_bytes()
    budget = max(vmem_limit - (8 << 20), 8 << 20)
    tc = _pick_channel_block(b, h, w, img1.dtype.itemsize, window_size, budget)
    g = b // tc

    # Channels packed along SUBLANES: (N, C, H, W) -> (G, TC*H, W) is a pure
    # reshape of contiguous memory (no host transpose, no extra HBM pass).
    # Inputs stay in their original dtype; the kernel casts after the load.
    x = img1.reshape(g, tc * h, w)
    y = img2.reshape(g, tc * h, w)

    taps = _gaussian_taps(window_size)
    cw = _col_conv_matrix(w, window_size, taps)        # (W, Wo), shared, no kron
    mask = _valid_row_mask(tc, h, window_size)         # (TC*H, 1) 0/1 row mask

    kernel = functools.partial(_ssim_kernel, taps=tuple(taps))

    partial_sums = pl.pallas_call(
        kernel,
        out_shape=jax.ShapeDtypeStruct((g, 1, 1), jnp.float32),
        grid=(g,),
        in_specs=[
            pl.BlockSpec((1, tc * h, w), lambda i: (i, 0, 0)),
            pl.BlockSpec((1, tc * h, w), lambda i: (i, 0, 0)),
            pl.BlockSpec((w, wo), lambda i: (0, 0)),
            pl.BlockSpec((tc * h, 1), lambda i: (0, 0)),
            pl.BlockSpec(memory_space=pltpu.MemorySpace.SMEM),
        ],
        out_specs=pl.BlockSpec((1, 1, 1), lambda i: (i, 0, 0)),
        compiler_params=pltpu.CompilerParams(
            dimension_semantics=("parallel",),
            vmem_limit_bytes=vmem_limit,
        ),
    )(x, y, cw, mask, stats)

    # Mean over batch, channels and valid spatial positions (== piqa reduction).
    return jnp.sum(partial_sums) / (b * ho * wo)


def ssim_ref(img1, img2, window_size=WINDOW_SIZE):
    """Pure-JAX reference mirroring torch/piqa SSIM (for correctness check)."""
    img1 = img1.astype(jnp.float32)
    img2 = img2.astype(jnp.float32)
    x = (img1 - img1.min()) / (img1.max() - img1.min() + 1e-8)
    y = (img2 - img2.min()) / (img2.max() - img2.min() + 1e-8)
    if x.ndim == 5:
        x, y = x[:, 0], y[:, 0]
    c = x.shape[1]
    g = jnp.array(_gaussian_taps(window_size), jnp.float32)
    w2d = jnp.broadcast_to((g[:, None] * g[None, :])[None, None],
                           (c, 1, window_size, window_size))

    def conv(a):
        return jax.lax.conv_general_dilated(
            a, w2d, window_strides=(1, 1), padding="VALID",
            dimension_numbers=("NCHW", "OIHW", "NCHW"),
            feature_group_count=c)

    mu_x, mu_y = conv(x), conv(y)
    mu_xx, mu_yy, mu_xy = mu_x * mu_x, mu_y * mu_y, mu_x * mu_y
    sigma_xx = conv(x * x) - mu_xx
    sigma_yy = conv(y * y) - mu_yy
    sigma_xy = conv(x * y) - mu_xy
    cs = (2.0 * sigma_xy + C2) / (sigma_xx + sigma_yy + C2)
    ss = (2.0 * mu_xy + C1) / (mu_xx + mu_yy + C1) * cs
    return jnp.mean(ss)


if __name__ == "__main__":
    key = jax.random.PRNGKey(0)
    k1, k2 = jax.random.split(key)
    img1 = jax.random.uniform(k1, (2, 4, 16, 16), jnp.float32)
    img2 = img1 + 0.05 * jax.random.normal(k2, (2, 4, 16, 16), jnp.float32)

    out = jax.block_until_ready(ssim_pallas(img1, img2))
    ref = ssim_ref(img1, img2)
    assert jnp.allclose(out, ref, atol=1e-5, rtol=1e-5), (float(out), float(ref))
    print("KERNEL_OK")
</pallas_src>

<mosaic_0001>
module attributes {stable_mosaic.version = 11 : i64} {
  func.func @_ssim_kernel(%arg0: i32, %arg1: memref<1x64x16xf32, #tpu.memory_space<vmem>>, %arg2: memref<1x64x16xf32, #tpu.memory_space<vmem>>, %arg3: memref<16x6xf32, #tpu.memory_space<vmem>>, %arg4: memref<64x1xf32, #tpu.memory_space<vmem>>, %arg5: memref<4xf32, #tpu.memory_space<smem>>, %arg6: memref<1x1x1xf32, #tpu.memory_space<vmem>>) attributes {dimension_semantics = [#tpu.dimension_semantics<parallel>], iteration_bounds = array<i64: 2>, scalar_prefetch = 0 : i64, scratch_operands = 0 : i64, tpu.core_type = #tpu.core_type<tc>, window_params = [{transform_indices = @transform_0, window_bounds = array<i64: 1, 64, 16>}, {transform_indices = @transform_1, window_bounds = array<i64: 1, 64, 16>}, {pipeline_mode = #tpu.pipeline_mode<synchronous>, transform_indices = @transform_2, window_bounds = array<i64: 16, 6>}, {pipeline_mode = #tpu.pipeline_mode<synchronous>, transform_indices = @transform_3, window_bounds = array<i64: 64, 1>}, {transform_indices = @transform_4, window_bounds = array<i64: 4>}, {transform_indices = @transform_5, window_bounds = array<i64: 1, 1, 1>}]} {
    %c0 = arith.constant 0 : index
    %c0_0 = arith.constant 0 : index
    %c0_1 = arith.constant 0 : index
    %0 = vector.load %arg1[%c0, %c0_0, %c0_1] : memref<1x64x16xf32, #tpu.memory_space<vmem>>, vector<1x64x16xf32>
    %1 = vector.shape_cast %0 : vector<1x64x16xf32> to vector<64x16xf32>
    %c0_2 = arith.constant 0 : index
    %2 = memref.load %arg5[%c0_2] : memref<4xf32, #tpu.memory_space<smem>>
    %3 = vector.broadcast %2 : f32 to vector<64x16xf32>
    %4 = arith.subf %1, %3 : vector<64x16xf32>
    %c1 = arith.constant 1 : index
    %5 = memref.load %arg5[%c1] : memref<4xf32, #tpu.memory_space<smem>>
    %6 = vector.broadcast %5 : f32 to vector<64x16xf32>
    %7 = arith.mulf %4, %6 : vector<64x16xf32>
    %c0_3 = arith.constant 0 : index
    %c0_4 = arith.constant 0 : index
    %c0_5 = arith.constant 0 : index
    %8 = vector.load %arg2[%c0_3, %c0_4, %c0_5] : memref<1x64x16xf32, #tpu.memory_space<vmem>>, vector<1x64x16xf32>
    %9 = vector.shape_cast %8 : vector<1x64x16xf32> to vector<64x16xf32>
    %c2 = arith.constant 2 : index
    %10 = memref.load %arg5[%c2] : memref<4xf32, #tpu.memory_space<smem>>
    %11 = vector.broadcast %10 : f32 to vector<64x16xf32>
    %12 = arith.subf %9, %11 : vector<64x16xf32>
    %c3 = arith.constant 3 : index
    %13 = memref.load %arg5[%c3] : memref<4xf32, #tpu.memory_space<smem>>
    %14 = vector.broadcast %13 : f32 to vector<64x16xf32>
    %15 = arith.mulf %12, %14 : vector<64x16xf32>
    %cst = arith.constant 0.000000e+00 : f32
    %16 = vector.broadcast %cst : f32 to vector<10x16xf32>
    %17 = arith.mulf %7, %7 : vector<64x16xf32>
    %18 = arith.mulf %15, %15 : vector<64x16xf32>
    %19 = arith.mulf %7, %15 : vector<64x16xf32>
    %20 = tpu.concatenate %7, %15, %17, %18, %19, %16 in 0 : vector<64x16xf32>, vector<64x16xf32>, vector<64x16xf32>, vector<64x16xf32>, vector<64x16xf32>, vector<10x16xf32> -> vector<330x16xf32>
    %c0_6 = arith.constant 0 : index
    %c0_7 = arith.constant 0 : index
    %21 = vector.load %arg3[%c0_6, %c0_7] : memref<16x6xf32, #tpu.memory_space<vmem>>, vector<16x6xf32>
    %cst_8 = arith.constant dense<0.000000e+00> : vector<330x6xf32>
    %22 = tpu.matmul %20, %21, %cst_8 {dimension_numbers = #tpu.dot_dimension_numbers<[1], [0], [0], [1], [0, 0, 1, 1], [], []>} : vector<330x16xf32>, vector<16x6xf32>, vector<330x6xf32> -> vector<330x6xf32>
    %23 = vector.extract_strided_slice %22 {offsets = [0, 0], sizes = [320, 6], strides = [1, 1]} : vector<330x6xf32> to vector<320x6xf32>
    %cst_9 = arith.constant 0.00102838012 : f32
    %24 = vector.broadcast %cst_9 : f32 to vector<320x6xf32>
    %25 = arith.mulf %24, %23 : vector<320x6xf32>
    %26 = vector.extract_strided_slice %22 {offsets = [1, 0], sizes = [320, 6], strides = [1, 1]} : vector<330x6xf32> to vector<320x6xf32>
    %cst_10 = arith.constant 0.00759875821 : f32
    %27 = vector.broadcast %cst_10 : f32 to vector<320x6xf32>
    %28 = arith.mulf %27, %26 : vector<320x6xf32>
    %29 = arith.addf %25, %28 : vector<320x6xf32>
    %30 = vector.extract_strided_slice %22 {offsets = [2, 0], sizes = [320, 6], strides = [1, 1]} : vector<330x6xf32> to vector<320x6xf32>
    %cst_11 = arith.constant 0.0360007733 : f32
    %31 = vector.broadcast %cst_11 : f32 to vector<320x6xf32>
    %32 = arith.mulf %31, %30 : vector<320x6xf32>
    %33 = arith.addf %29, %32 : vector<320x6xf32>
    %34 = vector.extract_strided_slice %22 {offsets = [3, 0], sizes = [320, 6], strides = [1, 1]} : vector<330x6xf32> to vector<320x6xf32>
    %cst_12 = arith.constant 0.109360687 : f32
    %35 = vector.broadcast %cst_12 : f32 to vector<320x6xf32>
    %36 = arith.mulf %35, %34 : vector<320x6xf32>
    %37 = arith.addf %33, %36 : vector<320x6xf32>
    %38 = vector.extract_strided_slice %22 {offsets = [4, 0], sizes = [320, 6], strides = [1, 1]} : vector<330x6xf32> to vector<320x6xf32>
    %cst_13 = arith.constant 0.213005543 : f32
    %39 = vector.broadcast %cst_13 : f32 to vector<320x6xf32>
    %40 = arith.mulf %39, %38 : vector<320x6xf32>
    %41 = arith.addf %37, %40 : vector<320x6xf32>
    %42 = vector.extract_strided_slice %22 {offsets = [5, 0], sizes = [320, 6], strides = [1, 1]} : vector<330x6xf32> to vector<320x6xf32>
    %cst_14 = arith.constant 0.266011715 : f32
    %43 = vector.broadcast %cst_14 : f32 to vector<320x6xf32>
    %44 = arith.mulf %43, %42 : vector<320x6xf32>
    %45 = arith.addf %41, %44 : vector<320x6xf32>
    %46 = vector.extract_strided_slice %22 {offsets = [6, 0], sizes = [320, 6], strides = [1, 1]} : vector<330x6xf32> to vector<320x6xf32>
    %cst_15 = arith.constant 0.213005543 : f32
    %47 = vector.broadcast %cst_15 : f32 to vector<320x6xf32>
    %48 = arith.mulf %47, %46 : vector<320x6xf32>
    %49 = arith.addf %45, %48 : vector<320x6xf32>
    %50 = vector.extract_strided_slice %22 {offsets = [7, 0], sizes = [320, 6], strides = [1, 1]} : vector<330x6xf32> to vector<320x6xf32>
    %cst_16 = arith.constant 0.109360687 : f32
    %51 = vector.broadcast %cst_16 : f32 to vector<320x6xf32>
    %52 = arith.mulf %51, %50 : vector<320x6xf32>
    %53 = arith.addf %49, %52 : vector<320x6xf32>
    %54 = vector.extract_strided_slice %22 {offsets = [8, 0], sizes = [320, 6], strides = [1, 1]} : vector<330x6xf32> to vector<320x6xf32>
    %cst_17 = arith.constant 0.0360007733 : f32
    %55 = vector.broadcast %cst_17 : f32 to vector<320x6xf32>
    %56 = arith.mulf %55, %54 : vector<320x6xf32>
    %57 = arith.addf %53, %56 : vector<320x6xf32>
    %58 = vector.extract_strided_slice %22 {offsets = [9, 0], sizes = [320, 6], strides = [1, 1]} : vector<330x6xf32> to vector<320x6xf32>
    %cst_18 = arith.constant 0.00759875821 : f32
    %59 = vector.broadcast %cst_18 : f32 to vector<320x6xf32>
    %60 = arith.mulf %59, %58 : vector<320x6xf32>
    %61 = arith.addf %57, %60 : vector<320x6xf32>
    %62 = vector.extract_strided_slice %22 {offsets = [10, 0], sizes = [320, 6], strides = [1, 1]} : vector<330x6xf32> to vector<320x6xf32>
    %cst_19 = arith.constant 0.00102838012 : f32
    %63 = vector.broadcast %cst_19 : f32 to vector<320x6xf32>
    %64 = arith.mulf %63, %62 : vector<320x6xf32>
    %65 = arith.addf %61, %64 : vector<320x6xf32>
    %66 = vector.extract_strided_slice %65 {offsets = [0, 0], sizes = [64, 6], strides = [1, 1]} : vector<320x6xf32> to vector<64x6xf32>
    %67 = vector.extract_strided_slice %65 {offsets = [64, 0], sizes = [64, 6], strides = [1, 1]} : vector<320x6xf32> to vector<64x6xf32>
    %68 = vector.extract_strided_slice %65 {offsets = [128, 0], sizes = [64, 6], strides = [1, 1]} : vector<320x6xf32> to vector<64x6xf32>
    %69 = vector.extract_strided_slice %65 {offsets = [192, 0], sizes = [64, 6], strides = [1, 1]} : vector<320x6xf32> to vector<64x6xf32>
    %70 = vector.extract_strided_slice %65 {offsets = [256, 0], sizes = [64, 6], strides = [1, 1]} : vector<320x6xf32> to vector<64x6xf32>
    %71 = arith.mulf %66, %66 : vector<64x6xf32>
    %72 = arith.mulf %67, %67 : vector<64x6xf32>
    %73 = arith.mulf %66, %67 : vector<64x6xf32>
    %74 = arith.subf %68, %71 : vector<64x6xf32>
    %75 = arith.subf %69, %72 : vector<64x6xf32>
    %76 = arith.subf %70, %73 : vector<64x6xf32>
    %cst_20 = arith.constant 2.000000e+00 : f32
    %77 = vector.broadcast %cst_20 : f32 to vector<64x6xf32>
    %78 = arith.mulf %77, %76 : vector<64x6xf32>
    %cst_21 = arith.constant 8.99999984E-4 : f32
    %79 = vector.broadcast %cst_21 : f32 to vector<64x6xf32>
    %80 = arith.addf %78, %79 : vector<64x6xf32>
    %cst_22 = arith.constant 2.000000e+00 : f32
    %81 = vector.broadcast %cst_22 : f32 to vector<64x6xf32>
    %82 = arith.mulf %81, %73 : vector<64x6xf32>
    %cst_23 = arith.constant 9.99999974E-5 : f32
    %83 = vector.broadcast %cst_23 : f32 to vector<64x6xf32>
    %84 = arith.addf %82, %83 : vector<64x6xf32>
    %85 = arith.mulf %80, %84 : vector<64x6xf32>
    %86 = arith.addf %74, %75 : vector<64x6xf32>
    %cst_24 = arith.constant 8.99999984E-4 : f32
    %87 = vector.broadcast %cst_24 : f32 to vector<64x6xf32>
    %88 = arith.addf %86, %87 : vector<64x6xf32>
    %89 = arith.addf %71, %72 : vector<64x6xf32>
    %cst_25 = arith.constant 9.99999974E-5 : f32
    %90 = vector.broadcast %cst_25 : f32 to vector<64x6xf32>
    %91 = arith.addf %89, %90 : vector<64x6xf32>
    %92 = arith.mulf %88, %91 : vector<64x6xf32>
    %93 = tpu.reciprocal %92 : vector<64x6xf32> -> vector<64x6xf32>
    %94 = arith.mulf %85, %93 : vector<64x6xf32>
    %c0_26 = arith.constant 0 : index
    %c0_27 = arith.constant 0 : index
    %95 = vector.load %arg4[%c0_26, %c0_27] : memref<64x1xf32, #tpu.memory_space<vmem>>, vector<64x1xf32>
    %cst_28 = arith.constant 0.000000e+00 : f32
    %96 = vector.broadcast %cst_28 : f32 to vector<64x1xf32>
    %97 = arith.cmpf ogt, %95, %96 : vector<64x1xf32>
    %cst_29 = arith.constant 0.000000e+00 : f32
    %98 = vector.shape_cast %97 : vector<64x1xi1> to vector<64x1xi1>
    %99 = vector.broadcast %98 : vector<64x1xi1> to vector<64x6xi1>
    %100 = vector.broadcast %cst_29 : f32 to vector<64x6xf32>
    %101 = arith.select %99, %94, %100 : vector<64x6xi1>, vector<64x6xf32>
    %102 = vector.shape_cast %101 : vector<64x6xf32> to vector<1x64x6xf32>
    %cst_30 = arith.constant dense<0.000000e+00> : vector<1xf32>
    %103 = vector.multi_reduction <add>, %102, %cst_30 [1, 2] : vector<1x64x6xf32> to vector<1xf32>
    %104 = vector.shape_cast %103 : vector<1xf32> to vector<1x1x1xf32>
    %105 = vector.extract %104[0, 0, 0] : f32 from vector<1x1x1xf32>
    %106 = vector.broadcast %105 : f32 to vector<1x1x1xf32>
    %c0_31 = arith.constant 0 : index
    %c0_32 = arith.constant 0 : index
    %c0_33 = arith.constant 0 : index
    %107 = vector.load %arg6[%c0_31, %c0_32, %c0_33] : memref<1x1x1xf32, #tpu.memory_space<vmem>>, vector<1x1x1xf32>
    tpu.vector_store %arg6[%c0_31, %c0_32, %c0_33], %106 {strides = array<i32>} : memref<1x1x1xf32, #tpu.memory_space<vmem>>, vector<1x1x1xf32>,
    return
  }
  func.func @transform_0(%arg0: i32) -> (i32, i32, i32) {
    %c0_i32 = arith.constant 0 : i32
    %c0_i32_0 = arith.constant 0 : i32
    %c0_i32_1 = arith.constant 0 : i32
    return %arg0, %c0_i32, %c0_i32_0 : i32, i32, i32
  }
  func.func @transform_1(%arg0: i32) -> (i32, i32, i32) {
    %c0_i32 = arith.constant 0 : i32
    %c0_i32_0 = arith.constant 0 : i32
    %c0_i32_1 = arith.constant 0 : i32
    return %arg0, %c0_i32, %c0_i32_0 : i32, i32, i32
  }
  func.func @transform_2(%arg0: i32) -> (i32, i32) {
    %c0_i32 = arith.constant 0 : i32
    %c0_i32_0 = arith.constant 0 : i32
    %c0_i32_1 = arith.constant 0 : i32
    return %c0_i32, %c0_i32_0 : i32, i32
  }
  func.func @transform_3(%arg0: i32) -> (i32, i32) {
    %c0_i32 = arith.constant 0 : i32
    %c0_i32_0 = arith.constant 0 : i32
    %c0_i32_1 = arith.constant 0 : i32
    return %c0_i32, %c0_i32_0 : i32, i32
  }
  func.func @transform_4(%arg0: i32) -> i32 {
    %c0_i32 = arith.constant 0 : i32
    %c0_i32_0 = arith.constant 0 : i32
    return %c0_i32 : i32
  }
  func.func @transform_5(%arg0: i32) -> (i32, i32, i32) {
    %c0_i32 = arith.constant 0 : i32
    %c0_i32_0 = arith.constant 0 : i32
    %c0_i32_1 = arith.constant 0 : i32
    return %arg0, %c0_i32, %c0_i32_0 : i32, i32, i32
  }
}

</mosaic_0001>

<llo_original>
// kernel: ssim_pallas.1
$region0: #{ssim_pallas.1}
  #allocation0 [shape = 'u32[]', space=smem, size = 0x4, offset = 0x4, fixed_abs, tag = 'smem constant byte address 0x4 - core index']
  #allocation1 [shape = 'u32[144,128]{1,0:T(1,128)}', space=vmem, size = 0x12000, scoped, tag = 'internal scratch']
  %s0 = inlined_call_operand.vmem [shape: f32[2,64,16], index: 0, kind: input, shape index: {}]
  %s1 = inlined_call_operand.vmem [shape: f32[2,64,16], index: 1, kind: input, shape index: {}]
  %s2 = inlined_call_operand.vmem [shape: f32[16,6], index: 2, kind: input, shape index: {}]
  %s3 = inlined_call_operand.vmem [shape: f32[64,1], index: 3, kind: input, shape index: {}]
  %s4 = inlined_call_operand.vmem [shape: f32[4], index: 4, kind: input, shape index: {}]
  %s5 = inlined_call_operand.vmem [shape: f32[2,1,1], index: 5, kind: output, shape index: {}]
  %s6 = sld [smem:[#allocation0]]
  $region57: #{ssim_pallas.1} parent=0
    _
  %s8 = ssub.s32 1, %s6
  %s9 = scalar_select 0, %s8, %s6
  $region1: #{ssim_pallas.1} parent=0
    #allocation2 [shape = 'u8[512]{0}', space=smem, size = 0x200, scoped, tag = 'input window, operand 4, single buffered']
    #allocation3 [shape = 's32[2]{0}', space=sflag, size = 0x8, scoped, tag = 'scoped memory for ssim_pallas.1']
    %10 = vsyncpa [#allocation3], 0
    loop: start=0, step=1, limit=4
    $region2: #{ssim_pallas.1} parent=1 // loop_pre_header
      _
    $region3: #{ssim_pallas.1} parent=1 // loop_header
      %s12 = sphi 0, %s16
      %p13 = scmp.ge.s32.totalorder %s12, 4
      %s22 = sphi 0, %s24
      %s25 = sphi 0, %s22
      %s26 = sphi 0, %s25
      %s42 = sphi 0, %s26
      %s48 = sphi 0, %s50
      %s51 = sphi 0, %s48
      %s52 = sphi 0, %s51
      %s68 = sphi 0, %s52
      %s72 = sphi 0, %s72
      %s74 = sphi 0, %s72
      %s75 = sphi 0, %s74
      %s89 = sphi 0, %s75
      %s93 = sphi 0, %s93
      %s95 = sphi 0, %s93
      %s96 = sphi 0, %s95
      %s110 = sphi 0, %s96
      %s114 = sphi 0, %s114
      %s116 = sphi 0, %s114
      %s117 = sphi 0, %s116
      %s131 = sphi 0, %s117
      %s137 = sphi 0, %s139
      %s140 = sphi 0, %s137
      %s141 = sphi 0, %s140
      %s157 = sphi 0, %s141
    $region4: #{ssim_pallas.1} parent=1 // loop_header_branch
      %15 = sbr.rel (%p13) target = $region8
    $region5: #{ssim_pallas.1} parent=1 // loop_body
      %s17 = ssub.s32 %s12, 1
      %s18 = ssub.s32 %s12, 2
      %s19 = sadd.s32 %s12, 1
      %s20 = ssub.s32 %s12, %s19
      %p21 = scmp.eq.s32.totalorder %s20, 0
      %s23 = sadd.s32 %s22, 1
      %s24 = scalar_select %p21, %s22, %s23
      %p27 = pneg %p21
      %p28 = scmp.eq.s32.totalorder %s12, 1
      %p29 = por %p27, %p28
      %p30 = scmp.ne.s32.totalorder %s22, %s25
      %p31 = scmp.eq.s32.totalorder %s12, 0
      %p32 = por %p30, %p31
      %p33 = scmp.ne.s32.totalorder %s22, %s25
      %p34 = scmp.eq.s32.totalorder %s17, 1
      %p35 = por %p33, %p34
      %p36 = scmp.ne.s32.totalorder %s25, %s26
      %p37 = scmp.eq.s32.totalorder %s17, 0
      %p38 = por %p36, %p37
      %p39 = scmp.ne.s32.totalorder %s25, %s26
      %p40 = scmp.eq.s32.totalorder %s18, 1
      %p41 = por %p39, %p40
      %p43 = scmp.ne.s32.totalorder %s26, %s42
      %p44 = scmp.eq.s32.totalorder %s18, 0
      %p45 = por %p43, %p44
      %s46 = ssub.s32 %s12, %s19
      %p47 = scmp.eq.s32.totalorder %s46, 0
      %s49 = sadd.s32 %s48, 1
      %s50 = scalar_select %p47, %s48, %s49
      %p53 = pneg %p47
      %p54 = scmp.eq.s32.totalorder %s12, 1
      %p55 = por %p53, %p54
      %p56 = scmp.ne.s32.totalorder %s48, %s51
      %p57 = scmp.eq.s32.totalorder %s12, 0
      %p58 = por %p56, %p57
      %p59 = scmp.ne.s32.totalorder %s48, %s51
      %p60 = scmp.eq.s32.totalorder %s17, 1
      %p61 = por %p59, %p60
      %p62 = scmp.ne.s32.totalorder %s51, %s52
      %p63 = scmp.eq.s32.totalorder %s17, 0
      %p64 = por %p62, %p63
      %p65 = scmp.ne.s32.totalorder %s51, %s52
      %p66 = scmp.eq.s32.totalorder %s18, 1
      %p67 = por %p65, %p66
      %p69 = scmp.ne.s32.totalorder %s52, %s68
      %p70 = scmp.eq.s32.totalorder %s18, 0
      %p71 = por %p69, %p70
      %s73 = sadd.s32 %s72, 1
      %p76 = scmp.eq.s32.totalorder %s12, 1
      %p77 = scmp.ne.s32.totalorder %s72, %s74
      %p78 = scmp.eq.s32.totalorder %s12, 0
      %p79 = por %p77, %p78
      %p80 = scmp.ne.s32.totalorder %s72, %s74
      %p81 = scmp.eq.s32.totalorder %s17, 1
      %p82 = por %p80, %p81
      %p83 = scmp.ne.s32.totalorder %s74, %s75
      %p84 = scmp.eq.s32.totalorder %s17, 0
      %p85 = por %p83, %p84
      %p86 = scmp.ne.s32.totalorder %s74, %s75
      %p87 = scmp.eq.s32.totalorder %s18, 1
      %p88 = por %p86, %p87
      %p90 = scmp.ne.s32.totalorder %s75, %s89
      %p91 = scmp.eq.s32.totalorder %s18, 0
      %p92 = por %p90, %p91
      %s94 = sadd.s32 %s93, 1
      %p97 = scmp.eq.s32.totalorder %s12, 1
      %p98 = scmp.ne.s32.totalorder %s93, %s95
      %p99 = scmp.eq.s32.totalorder %s12, 0
      %p100 = por %p98, %p99
      %p101 = scmp.ne.s32.totalorder %s93, %s95
      %p102 = scmp.eq.s32.totalorder %s17, 1
      %p103 = por %p101, %p102
      %p104 = scmp.ne.s32.totalorder %s95, %s96
      %p105 = scmp.eq.s32.totalorder %s17, 0
      %p106 = por %p104, %p105
      %p107 = scmp.ne.s32.totalorder %s95, %s96
      %p108 = scmp.eq.s32.totalorder %s18, 1
      %p109 = por %p107, %p108
      %p111 = scmp.ne.s32.totalorder %s96, %s110
      %p112 = scmp.eq.s32.totalorder %s18, 0
      %p113 = por %p111, %p112
      %s115 = sadd.s32 %s114, 1
      %p118 = scmp.eq.s32.totalorder %s12, 1
      %p119 = scmp.ne.s32.totalorder %s114, %s116
      %p120 = scmp.eq.s32.totalorder %s12, 0
      %p121 = por %p119, %p120
      %p122 = scmp.ne.s32.totalorder %s114, %s116
      %p123 = scmp.eq.s32.totalorder %s17, 1
      %p124 = por %p122, %p123
      %p125 = scmp.ne.s32.totalorder %s116, %s117
      %p126 = scmp.eq.s32.totalorder %s17, 0
      %p127 = por %p125, %p126
      %p128 = scmp.ne.s32.totalorder %s116, %s117
      %p129 = scmp.eq.s32.totalorder %s18, 1
      %p130 = por %p128, %p129
      %p132 = scmp.ne.s32.totalorder %s117, %s131
      %p133 = scmp.eq.s32.totalorder %s18, 0
      %p134 = por %p132, %p133
      %s135 = ssub.s32 %s12, %s19
      %p136 = scmp.eq.s32.totalorder %s135, 0
      %s138 = sadd.s32 %s137, 1
      %s139 = scalar_select %p136, %s137, %s138
      %p142 = pneg %p136
      %p143 = scmp.eq.s32.totalorder %s12, 1
      %p144 = por %p142, %p143
      %p145 = scmp.ne.s32.totalorder %s137, %s140
      %p146 = scmp.eq.s32.totalorder %s12, 0
      %p147 = por %p145, %p146
      %p148 = scmp.ne.s32.totalorder %s137, %s140
      %p149 = scmp.eq.s32.totalorder %s17, 1
      %p150 = por %p148, %p149
      %p151 = scmp.ne.s32.totalorder %s140, %s141
      %p152 = scmp.eq.s32.totalorder %s17, 0
      %p153 = por %p151, %p152
      %p154 = scmp.ne.s32.totalorder %s140, %s141
      %p155 = scmp.eq.s32.totalorder %s18, 1
      %p156 = por %p154, %p155
      %p158 = scmp.ne.s32.totalorder %s141, %s157
      %p159 = scmp.eq.s32.totalorder %s18, 0
      %p160 = por %p158, %p159
      %p161 = scmp.le.s32.totalorder 1, %s12
      %p162 = scmp.lt.s32.totalorder %s12, 3
      %p163 = pnand %p161, %p162
      %p164 = pneg %p163
      // Predicated region
      $region9: #{ssim_pallas.1} parent=5 // pred_check
        _
      $region10: #{ssim_pallas.1} parent=5 // pred_check_branch
        %166 = sbr.rel (%p163) target = $region12
      $region11: #{ssim_pallas.1} parent=5 // pred_region
        %s167 = ssub.s32 %s12, 1
        // Predicated region
        $region13: #{ssim_pallas.1} parent=11 // pred_check
          %p168 = pneg %p85
        $region14: #{ssim_pallas.1} parent=11 // pred_check_branch
          %170 = sbr.rel (%p168) target = $region16
        $region15: #{ssim_pallas.1} parent=11 // pred_region
          _
        $region16: #{ssim_pallas.1} parent=11 // pred_fallthru
          _
        // Predicated region
        $region17: #{ssim_pallas.1} parent=11 // pred_check
          %p171 = pneg %p106
        $region18: #{ssim_pallas.1} parent=11 // pred_check_branch
          %173 = sbr.rel (%p171) target = $region20
        $region19: #{ssim_pallas.1} parent=11 // pred_region
          _
        $region20: #{ssim_pallas.1} parent=11 // pred_fallthru
          _
        // Predicated region
        $region21: #{ssim_pallas.1} parent=11 // pred_check
          %p174 = pneg %p127
        $region22: #{ssim_pallas.1} parent=11 // pred_check_branch
          %176 = sbr.rel (%p174) target = $region24
        $region23: #{ssim_pallas.1} parent=11 // pred_region
          %s178 = ssub.s32 16, 16
          %179 = vsyncadd [#allocation3], %s178
          %s181 = sshll.u32 %s4, 4
          %s182 = int_to_ptr.vmem [resolvable:$true] %s181
          %184 = dma.vmem_to_smem %s182, 16, [#allocation2], [#allocation3]
        $region24: #{ssim_pallas.1} parent=11 // pred_fallthru
          _
      $region12: #{ssim_pallas.1} parent=5 // pred_fallthru
        _
      %p185 = scmp.lt.s32.totalorder %s12, 2
      // Predicated region
      $region25: #{ssim_pallas.1} parent=5 // pred_check
        %p186 = pneg %p185
      $region26: #{ssim_pallas.1} parent=5 // pred_check_branch
        %188 = sbr.rel (%p186) target = $region28
      $region27: #{ssim_pallas.1} parent=5 // pred_region
        // Predicated region
        $region29: #{ssim_pallas.1} parent=27 // pred_check
          %p189 = pneg %p32
        $region30: #{ssim_pallas.1} parent=27 // pred_check_branch
          %191 = sbr.rel (%p189) target = $region32
        $region31: #{ssim_pallas.1} parent=27 // pred_region
          %p192 = scmp.lt.s32.totalorder %s12, 1
          %s193 = scalar_select %p192, %s12, 1
          %s194 = smul.addr %s193, 8
          %s195 = smul.addr %s194, 8
          %s196 = scalar_lea.vmem %s0, %s195
        $region32: #{ssim_pallas.1} parent=27 // pred_fallthru
          _
        // Predicated region
        $region33: #{ssim_pallas.1} parent=27 // pred_check
          %p197 = pneg %p58
        $region34: #{ssim_pallas.1} parent=27 // pred_check_branch
          %199 = sbr.rel (%p197) target = $region36
        $region35: #{ssim_pallas.1} parent=27 // pred_region
          %p200 = scmp.lt.s32.totalorder %s12, 1
          %s201 = scalar_select %p200, %s12, 1
          %s202 = smul.addr %s201, 8
          %s203 = smul.addr %s202, 8
          %s204 = scalar_lea.vmem %s1, %s203
        $region36: #{ssim_pallas.1} parent=27 // pred_fallthru
          _
      $region28: #{ssim_pallas.1} parent=5 // pred_fallthru
        _
      %p205 = scmp.le.s32.totalorder 1, %s12
      %p206 = scmp.lt.s32.totalorder %s12, 3
      %p207 = pnand %p205, %p206
      %p208 = pneg %p207
      // Predicated region
      $region37: #{ssim_pallas.1} parent=5 // pred_check
        _
      $region38: #{ssim_pallas.1} parent=5 // pred_check_branch
        %210 = sbr.rel (%p207) target = $region40
      $region39: #{ssim_pallas.1} parent=5 // pred_region
        %s211 = ssub.s32 %s12, 1
        // Predicated region
        $region41: #{ssim_pallas.1} parent=39 // pred_check
          %p212 = pneg %p127
        $region42: #{ssim_pallas.1} parent=39 // pred_check_branch
          %214 = sbr.rel (%p212) target = $region44
        $region43: #{ssim_pallas.1} parent=39 // pred_region
          %215 = dma.done [#allocation3], 16
        $region44: #{ssim_pallas.1} parent=39 // pred_fallthru
          _
        %216 = sfence
        %p217 = scmp.lt.s32.totalorder %s17, 1
        %s218 = scalar_select %p217, %s17, 1
        %s219 = smul.addr %s218, 8
        %s220 = smul.addr %s219, 8
        %s221 = scalar_lea.vmem %s0, %s220
        %p222 = pneg %p38
        %p223 = pneg %p35
        %p224 = scmp.lt.s32.totalorder %s17, 1
        %s225 = scalar_select %p224, %s17, 1
        %s226 = smul.addr %s225, 8
        %s227 = smul.addr %s226, 8
        %s228 = scalar_lea.vmem %s1, %s227
        %p229 = pneg %p64
        %p230 = pneg %p61
        %p231 = pneg %p85
        %p232 = pneg %p82
        %p233 = pneg %p106
        %p234 = pneg %p103
        %p235 = pneg %p127
        %p236 = pneg %p124
        %p237 = pneg %p153
        %p238 = pneg %p150
        %p239 = scmp.lt.s32.totalorder %s17, 1
        %s240 = scalar_select %p239, %s17, 1
        %s241 = scalar_lea.vmem %s5, %s240
        %p242 = scmp.lt.s32.totalorder %s17, 1
        %s243 = scalar_select %p242, %s17, 1
        %s244 = smul.addr %s243, 8
        %s245 = smul.addr %s244, 8
        %s246 = scalar_lea.vmem %s0, %s245
        %p247 = scmp.lt.s32.totalorder %s17, 1
        %s248 = scalar_select %p247, %s17, 1
        %s249 = smul.addr %s248, 8
        %s250 = smul.addr %s249, 8
        %s251 = scalar_lea.vmem %s1, %s250
        %p252 = scmp.lt.s32.totalorder %s17, 1
        %s253 = scalar_select %p252, %s17, 1
        %s254 = scalar_lea.vmem %s5, %s253
        %v255 = vld [vmem:[%s246] sm:$0xff]
        %v256 = vld [vmem:[%s246 + $0x8] sm:$0xff]
        %v257 = vld [vmem:[%s246 + $0x10] sm:$0xff]
        %v258 = vld [vmem:[%s246 + $0x18] sm:$0xff]
        %v259 = vld [vmem:[%s246 + $0x20] sm:$0xff]
        %v260 = vld [vmem:[%s246 + $0x28] sm:$0xff]
        %v261 = vld [vmem:[%s246 + $0x30] sm:$0xff]
        %v262 = vld [vmem:[%s246 + $0x38] sm:$0xff]
        %s263 = sld [smem:[#allocation2]]
        %v264 = vstv %s263
        %v265 = vsub.f32 %v255, %v264
        %v266 = vsub.f32 %v256, %v264
        %v267 = vsub.f32 %v257, %v264
        %v268 = vsub.f32 %v258, %v264
        %v269 = vsub.f32 %v259, %v264
        %v270 = vsub.f32 %v260, %v264
        %v271 = vsub.f32 %v261, %v264
        %v272 = vsub.f32 %v262, %v264
        %s273 = sld [smem:[#allocation2 + $0x1]]
        %v274 = vstv %s273
        %v275 = vmul.f32 %v265, %v274
        %v276 = vmul.f32 %v266, %v274
        %v277 = vmul.f32 %v267, %v274
        %v278 = vmul.f32 %v268, %v274
        %v279 = vmul.f32 %v269, %v274
        %v280 = vmul.f32 %v270, %v274
        %v281 = vmul.f32 %v271, %v274
        %v282 = vmul.f32 %v272, %v274
        %v283 = vld [vmem:[%s251] sm:$0xff]
        %v284 = vld [vmem:[%s251 + $0x8] sm:$0xff]
        %v285 = vld [vmem:[%s251 + $0x10] sm:$0xff]
        %v286 = vld [vmem:[%s251 + $0x18] sm:$0xff]
        %v287 = vld [vmem:[%s251 + $0x20] sm:$0xff]
        %v288 = vld [vmem:[%s251 + $0x28] sm:$0xff]
        %v289 = vld [vmem:[%s251 + $0x30] sm:$0xff]
        %v290 = vld [vmem:[%s251 + $0x38] sm:$0xff]
        %s291 = sld [smem:[#allocation2 + $0x2]]
        %v292 = vstv %s291
        %v293 = vsub.f32 %v283, %v292
        %v294 = vsub.f32 %v284, %v292
        %v295 = vsub.f32 %v285, %v292
        %v296 = vsub.f32 %v286, %v292
        %v297 = vsub.f32 %v287, %v292
        %v298 = vsub.f32 %v288, %v292
        %v299 = vsub.f32 %v289, %v292
        %v300 = vsub.f32 %v290, %v292
        %s301 = sld [smem:[#allocation2 + $0x3]]
        %v302 = vstv %s301
        %v303 = vmul.f32 %v293, %v302
        %v304 = vmul.f32 %v294, %v302
        %v305 = vmul.f32 %v295, %v302
        %v306 = vmul.f32 %v296, %v302
        %v307 = vmul.f32 %v297, %v302
        %v308 = vmul.f32 %v298, %v302
        %v309 = vmul.f32 %v299, %v302
        %v310 = vmul.f32 %v300, %v302
        %v311 = vmul.f32 %v275, %v275
        %v312 = vmul.f32 %v276, %v276
        %v313 = vmul.f32 %v277, %v277
        %v314 = vmul.f32 %v278, %v278
        %v315 = vmul.f32 %v279, %v279
        %v316 = vmul.f32 %v280, %v280
        %v317 = vmul.f32 %v281, %v281
        %v318 = vmul.f32 %v282, %v282
        %v319 = vmul.f32 %v303, %v303
        %v320 = vmul.f32 %v304, %v304
        %v321 = vmul.f32 %v305, %v305
        %v322 = vmul.f32 %v306, %v306
        %v323 = vmul.f32 %v307, %v307
        %v324 = vmul.f32 %v308, %v308
        %v325 = vmul.f32 %v309, %v309
        %v326 = vmul.f32 %v310, %v310
        %v327 = vmul.f32 %v275, %v303
        %v328 = vmul.f32 %v276, %v304
        %v329 = vmul.f32 %v277, %v305
        %v330 = vmul.f32 %v278, %v306
        %v331 = vmul.f32 %v279, %v307
        %v332 = vmul.f32 %v280, %v308
        %v333 = vmul.f32 %v281, %v309
        %v334 = vmul.f32 %v282, %v310
        %v335 = vld [vmem:[%s2] sm:$0xff]
        %v336 = vld [vmem:[%s2 + $0x8] sm:$0xff]
        %vm337 = vcmask 130048
        %v339 = vsel %vm337, %v275, 0
        %v342 = vsel %vm337, %v276, 0
        %v345 = vsel %vm337, %v277, 0
        %v348 = vsel %vm337, %v278, 0
        %v351 = vsel %vm337, %v279, 0
        %v354 = vsel %vm337, %v280, 0
        %v357 = vsel %vm337, %v281, 0
        %v360 = vsel %vm337, %v282, 0
        %v363 = vsel %vm337, %v303, 0
        %v366 = vsel %vm337, %v304, 0
        %v369 = vsel %vm337, %v305, 0
        %v372 = vsel %vm337, %v306, 0
        %v375 = vsel %vm337, %v307, 0
        %v378 = vsel %vm337, %v308, 0
        %v381 = vsel %vm337, %v309, 0
        %v384 = vsel %vm337, %v310, 0
        %v387 = vsel %vm337, %v311, 0
        %v390 = vsel %vm337, %v312, 0
        %v393 = vsel %vm337, %v313, 0
        %v396 = vsel %vm337, %v314, 0
        %v399 = vsel %vm337, %v315, 0
        %v402 = vsel %vm337, %v316, 0
        %v405 = vsel %vm337, %v317, 0
        %v408 = vsel %vm337, %v318, 0
        %v411 = vsel %vm337, %v319, 0
        %v414 = vsel %vm337, %v320, 0
        %v417 = vsel %vm337, %v321, 0
        %v420 = vsel %vm337, %v322, 0
        %v423 = vsel %vm337, %v323, 0
        %v426 = vsel %vm337, %v324, 0
        %v429 = vsel %vm337, %v325, 0
        %v432 = vsel %vm337, %v326, 0
        %v435 = vsel %vm337, %v327, 0
        %v438 = vsel %vm337, %v328, 0
        %v441 = vsel %vm337, %v329, 0
        %v444 = vsel %vm337, %v330, 0
        %v447 = vsel %vm337, %v331, 0
        %v450 = vsel %vm337, %v332, 0
        %v453 = vsel %vm337, %v333, 0
        %v456 = vsel %vm337, %v334, 0
        %v459 = vsel %vm337, 0.0, 0
        %461 = vmatprep.subr.mxu0 0.0
        %462 = vmatpush1.msra.mxu0 %v335
        %463 = vmatprep.subr.mxu0 0.0
        %464 = vmatpush1.msra.mxu0 %v336
        %465 = vmatprep.subr.mxu0 0.0
        %466 = vmatpush1.msra.mxu0 0.0
        %467 = vmatprep.subr.mxu0 0.0
        %468 = vmatpush1.msra.mxu0 0.0
        %469 = vmatprep.subr.mxu0 0.0
        %470 = vmatpush1.msra.mxu0 0.0
        %471 = vmatprep.subr.mxu0 0.0
        %472 = vmatpush1.msra.mxu0 0.0
        %473 = vmatprep.subr.mxu0 0.0
        %474 = vmatpush1.msra.mxu0 0.0
        %475 = vmatprep.subr.mxu0 0.0
        %476 = vmatpush1.msra.mxu0 0.0
        %477 = vmatprep.subr.mxu0 0.0
        %478 = vmatpush1.msra.mxu0 0.0
        %479 = vmatprep.subr.mxu0 0.0
        %480 = vmatpush1.msra.mxu0 0.0
        %481 = vmatprep.subr.mxu0 0.0
        %482 = vmatpush1.msra.mxu0 0.0
        %483 = vmatprep.subr.mxu0 0.0
        %484 = vmatpush1.msra.mxu0 0.0
        %485 = vmatprep.subr.mxu0 0.0
        %486 = vmatpush1.msra.mxu0 0.0
        %487 = vmatprep.subr.mxu0 0.0
        %488 = vmatpush1.msra.mxu0 0.0
        %489 = vmatprep.subr.mxu0 0.0
        %490 = vmatpush1.msra.mxu0 0.0
        %491 = vmatprep.subr.mxu0 0.0
        %492 = vmatpush1.msra.mxu0 0.0
        %493 = vmatprep.subr.mxu0 0.0
        %494 = vmatpush1.msra.mxu0 0.0
        %495 = vmatprep.subr.mxu0 0.0
        %496 = vmatpush1.msra.mxu0 0.0
        %497 = vmatprep.subr.mxu0 0.0
        %498 = vmatpush1.msra.mxu0 0.0
        %499 = vmatprep.subr.mxu0 0.0
        %500 = vmatpush1.msra.mxu0 0.0
        %501 = vmatprep.subr.mxu0 0.0
        %502 = vmatpush1.msra.mxu0 0.0
        %503 = vmatprep.subr.mxu0 0.0
        %504 = vmatpush1.msra.mxu0 0.0
        %505 = vmatprep.subr.mxu0 0.0
        %506 = vmatpush1.msra.mxu0 0.0
        %507 = vmatprep.subr.mxu0 0.0
        %508 = vmatpush1.msra.mxu0 0.0
        %509 = vmatprep.subr.mxu0 0.0
        %510 = vmatpush1.msra.mxu0 0.0
        %511 = vmatprep.subr.mxu0 0.0
        %512 = vmatpush1.msra.mxu0 0.0
        %513 = vmatprep.subr.mxu0 0.0
        %514 = vmatpush1.msra.mxu0 0.0
        %515 = vmatprep.subr.mxu0 0.0
        %516 = vmatpush1.msra.mxu0 0.0
        %517 = vmatprep.subr.mxu0 0.0
        %518 = vmatpush1.msra.mxu0 0.0
        %519 = vmatprep.subr.mxu0 0.0
        %520 = vmatpush1.msra.mxu0 0.0
        %521 = vmatprep.subr.mxu0 0.0
        %522 = vmatpush1.msra.mxu0 0.0
        %523 = vmatprep.subr.mxu0 0.0
        %524 = vmatpush1.msra.mxu0 0.0
        %525 = vmatprep.mubr.f32.mxu0 0.0
        %526 = vmatmul.mubr.f32.gmra.mrb[0].mxu0 %v339
        %v527 = vpop.f32.mrb[0].mxu0
        %v528 = vadd.f32 0.0, %v527
        %v529 = vpop.f32.mrb[0].mxu0
        %530 = vmatprep.mubr.f32.mxu0 0.0
        %531 = vmatmul.mubr.f32.gmra.mrb[0].mxu0 %v342
        %v532 = vpop.f32.mrb[0].mxu0
        %v533 = vadd.f32 0.0, %v532
        %v534 = vpop.f32.mrb[0].mxu0
        %535 = vmatprep.mubr.f32.mxu0 0.0
        %536 = vmatmul.mubr.f32.gmra.mrb[0].mxu0 %v345
        %v537 = vpop.f32.mrb[0].mxu0
        %v538 = vadd.f32 0.0, %v537
        %v539 = vpop.f32.mrb[0].mxu0
        %540 = vmatprep.mubr.f32.mxu0 0.0
        %541 = vmatmul.mubr.f32.gmra.mrb[0].mxu0 %v348
        %v542 = vpop.f32.mrb[0].mxu0
        %v543 = vadd.f32 0.0, %v542
        %v544 = vpop.f32.mrb[0].mxu0
        %545 = vmatprep.mubr.f32.mxu0 0.0
        %546 = vmatmul.mubr.f32.gmra.mrb[0].mxu0 %v351
        %v547 = vpop.f32.mrb[0].mxu0
        %v548 = vadd.f32 0.0, %v547
        %v549 = vpop.f32.mrb[0].mxu0
        %550 = vmatprep.mubr.f32.mxu0 0.0
        %551 = vmatmul.mubr.f32.gmra.mrb[0].mxu0 %v354
        %v552 = vpop.f32.mrb[0].mxu0
        %v553 = vadd.f32 0.0, %v552
        %v554 = vpop.f32.mrb[0].mxu0
        %555 = vmatprep.mubr.f32.mxu0 0.0
        %556 = vmatmul.mubr.f32.gmra.mrb[0].mxu0 %v357
        %v557 = vpop.f32.mrb[0].mxu0
        %v558 = vadd.f32 0.0, %v557
        %v559 = vpop.f32.mrb[0].mxu0
        %560 = vmatprep.mubr.f32.mxu0 0.0
        %561 = vmatmul.mubr.f32.gmra.mrb[0].mxu0 %v360
        %v562 = vpop.f32.mrb[0].mxu0
        %v563 = vadd.f32 0.0, %v562
        %v564 = vpop.f32.mrb[0].mxu0
        %565 = vmatprep.mubr.f32.mxu0 0.0
        %566 = vmatmul.mubr.f32.gmra.mrb[0].mxu0 %v363
        %v567 = vpop.f32.mrb[0].mxu0
        %v568 = vadd.f32 0.0, %v567
        %v569 = vpop.f32.mrb[0].mxu0
        %570 = vmatprep.mubr.f32.mxu0 0.0
        %571 = vmatmul.mubr.f32.gmra.mrb[0].mxu0 %v366
        %v572 = vpop.f32.mrb[0].mxu0
        %v573 = vadd.f32 0.0, %v572
        %v574 = vpop.f32.mrb[0].mxu0
        %575 = vmatprep.mubr.f32.mxu0 0.0
        %576 = vmatmul.mubr.f32.gmra.mrb[0].mxu0 %v369
        %v577 = vpop.f32.mrb[0].mxu0
        %v578 = vadd.f32 0.0, %v577
        %v579 = vpop.f32.mrb[0].mxu0
        %580 = vmatprep.mubr.f32.mxu0 0.0
        %581 = vmatmul.mubr.f32.gmra.mrb[0].mxu0 %v372
        %v582 = vpop.f32.mrb[0].mxu0
        %v583 = vadd.f32 0.0, %v582
        %v584 = vpop.f32.mrb[0].mxu0
        %585 = vmatprep.mubr.f32.mxu0 0.0
        %586 = vmatmul.mubr.f32.gmra.mrb[0].mxu0 %v375
        %v587 = vpop.f32.mrb[0].mxu0
        %v588 = vadd.f32 0.0, %v587
        %v589 = vpop.f32.mrb[0].mxu0
        %590 = vmatprep.mubr.f32.mxu0 0.0
        %591 = vmatmul.mubr.f32.gmra.mrb[0].mxu0 %v378
        %v592 = vpop.f32.mrb[0].mxu0
        %v593 = vadd.f32 0.0, %v592
        %v594 = vpop.f32.mrb[0].mxu0
        %595 = vmatprep.mubr.f32.mxu0 0.0
        %596 = vmatmul.mubr.f32.gmra.mrb[0].mxu0 %v381
        %v597 = vpop.f32.mrb[0].mxu0
        %v598 = vadd.f32 0.0, %v597
        %v599 = vpop.f32.mrb[0].mxu0
        %600 = vmatprep.mubr.f32.mxu0 0.0
        %601 = vmatmul.mubr.f32.gmra.mrb[0].mxu0 %v384
        %v602 = vpop.f32.mrb[0].mxu0
        %v603 = vadd.f32 0.0, %v602
        %v604 = vpop.f32.mrb[0].mxu0
        %605 = vmatprep.mubr.f32.mxu0 0.0
        %606 = vmatmul.mubr.f32.gmra.mrb[0].mxu0 %v387
        %v607 = vpop.f32.mrb[0].mxu0
        %v608 = vadd.f32 0.0, %v607
        %v609 = vpop.f32.mrb[0].mxu0
        %610 = vmatprep.mubr.f32.mxu0 0.0
        %611 = vmatmul.mubr.f32.gmra.mrb[0].mxu0 %v390
        %v612 = vpop.f32.mrb[0].mxu0
        %v613 = vadd.f32 0.0, %v612
        %v614 = vpop.f32.mrb[0].mxu0
        %615 = vmatprep.mubr.f32.mxu0 0.0
        %616 = vmatmul.mubr.f32.gmra.mrb[0].mxu0 %v393
        %v617 = vpop.f32.mrb[0].mxu0
        %v618 = vadd.f32 0.0, %v617
        %v619 = vpop.f32.mrb[0].mxu0
        %620 = vmatprep.mubr.f32.mxu0 0.0
        %621 = vmatmul.mubr.f32.gmra.mrb[0].mxu0 %v396
        %v622 = vpop.f32.mrb[0].mxu0
        %v623 = vadd.f32 0.0, %v622
        %v624 = vpop.f32.mrb[0].mxu0
        %625 = vmatprep.mubr.f32.mxu0 0.0
        %626 = vmatmul.mubr.f32.gmra.mrb[0].mxu0 %v399
        %v627 = vpop.f32.mrb[0].mxu0
        %v628 = vadd.f32 0.0, %v627
        %v629 = vpop.f32.mrb[0].mxu0
        %630 = vmatprep.mubr.f32.mxu0 0.0
        %631 = vmatmul.mubr.f32.gmra.mrb[0].mxu0 %v402
        %v632 = vpop.f32.mrb[0].mxu0
        %v633 = vadd.f32 0.0, %v632
        %v634 = vpop.f32.mrb[0].mxu0
        %635 = vmatprep.mubr.f32.mxu0 0.0
        %636 = vmatmul.mubr.f32.gmra.mrb[0].mxu0 %v405
        %v637 = vpop.f32.mrb[0].mxu0
        %v638 = vadd.f32 0.0, %v637
        %v639 = vpop.f32.mrb[0].mxu0
        %640 = vmatprep.mubr.f32.mxu0 0.0
        %641 = vmatmul.mubr.f32.gmra.mrb[0].mxu0 %v408
        %v642 = vpop.f32.mrb[0].mxu0
        %v643 = vadd.f32 0.0, %v642
        %v644 = vpop.f32.mrb[0].mxu0
        %645 = vmatprep.mubr.f32.mxu0 0.0
        %646 = vmatmul.mubr.f32.gmra.mrb[0].mxu0 %v411
        %v647 = vpop.f32.mrb[0].mxu0
        %v648 = vadd.f32 0.0, %v647
        %v649 = vpop.f32.mrb[0].mxu0
        %650 = vmatprep.mubr.f32.mxu0 0.0
        %651 = vmatmul.mubr.f32.gmra.mrb[0].mxu0 %v414
        %v652 = vpop.f32.mrb[0].mxu0
        %v653 = vadd.f32 0.0, %v652
        %v654 = vpop.f32.mrb[0].mxu0
        %655 = vmatprep.mubr.f32.mxu0 0.0
        %656 = vmatmul.mubr.f32.gmra.mrb[0].mxu0 %v417
        %v657 = vpop.f32.mrb[0].mxu0
        %v658 = vadd.f32 0.0, %v657
        %v659 = vpop.f32.mrb[0].mxu0
        %660 = vmatprep.mubr.f32.mxu0 0.0
        %661 = vmatmul.mubr.f32.gmra.mrb[0].mxu0 %v420
        %v662 = vpop.f32.mrb[0].mxu0
        %v663 = vadd.f32 0.0, %v662
        %v664 = vpop.f32.mrb[0].mxu0
        %665 = vmatprep.mubr.f32.mxu0 0.0
        %666 = vmatmul.mubr.f32.gmra.mrb[0].mxu0 %v423
        %v667 = vpop.f32.mrb[0].mxu0
        %v668 = vadd.f32 0.0, %v667
        %v669 = vpop.f32.mrb[0].mxu0
        %670 = vmatprep.mubr.f32.mxu0 0.0
        %671 = vmatmul.mubr.f32.gmra.mrb[0].mxu0 %v426
        %v672 = vpop.f32.mrb[0].mxu0
        %v673 = vadd.f32 0.0, %v672
        %v674 = vpop.f32.mrb[0].mxu0
        %675 = vmatprep.mubr.f32.mxu0 0.0
        %676 = vmatmul.mubr.f32.gmra.mrb[0].mxu0 %v429
        %v677 = vpop.f32.mrb[0].mxu0
        %v678 = vadd.f32 0.0, %v677
        %v679 = vpop.f32.mrb[0].mxu0
        %680 = vmatprep.mubr.f32.mxu0 0.0
        %681 = vmatmul.mubr.f32.gmra.mrb[0].mxu0 %v432
        %v682 = vpop.f32.mrb[0].mxu0
        %v683 = vadd.f32 0.0, %v682
        %v684 = vpop.f32.mrb[0].mxu0
        %685 = vmatprep.mubr.f32.mxu0 0.0
        %686 = vmatmul.mubr.f32.gmra.mrb[0].mxu0 %v435
        %v687 = vpop.f32.mrb[0].mxu0
        %v688 = vadd.f32 0.0, %v687
        %v689 = vpop.f32.mrb[0].mxu0
        %690 = vmatprep.mubr.f32.mxu0 0.0
        %691 = vmatmul.mubr.f32.gmra.mrb[0].mxu0 %v438
        %v692 = vpop.f32.mrb[0].mxu0
        %v693 = vadd.f32 0.0, %v692
        %v694 = vpop.f32.mrb[0].mxu0
        %695 = vmatprep.mubr.f32.mxu0 0.0
        %696 = vmatmul.mubr.f32.gmra.mrb[0].mxu0 %v441
        %v697 = vpop.f32.mrb[0].mxu0
        %v698 = vadd.f32 0.0, %v697
        %v699 = vpop.f32.mrb[0].mxu0
        %700 = vmatprep.mubr.f32.mxu0 0.0
        %701 = vmatmul.mubr.f32.gmra.mrb[0].mxu0 %v444
        %v702 = vpop.f32.mrb[0].mxu0
        %v703 = vadd.f32 0.0, %v702
        %v704 = vpop.f32.mrb[0].mxu0
        %705 = vmatprep.mubr.f32.mxu0 0.0
        %706 = vmatmul.mubr.f32.gmra.mrb[0].mxu0 %v447
        %v707 = vpop.f32.mrb[0].mxu0
        %v708 = vadd.f32 0.0, %v707
        %v709 = vpop.f32.mrb[0].mxu0
        %710 = vmatprep.mubr.f32.mxu0 0.0
        %711 = vmatmul.mubr.f32.gmra.mrb[0].mxu0 %v450
        %v712 = vpop.f32.mrb[0].mxu0
        %v713 = vadd.f32 0.0, %v712
        %v714 = vpop.f32.mrb[0].mxu0
        %715 = vmatprep.mubr.f32.mxu0 0.0
        %716 = vmatmul.mubr.f32.gmra.mrb[0].mxu0 %v453
        %v717 = vpop.f32.mrb[0].mxu0
        %v718 = vadd.f32 0.0, %v717
        %v719 = vpop.f32.mrb[0].mxu0
        %720 = vmatprep.mubr.f32.mxu0 0.0
        %721 = vmatmul.mubr.f32.gmra.mrb[0].mxu0 %v456
        %v722 = vpop.f32.mrb[0].mxu0
        %v723 = vadd.f32 0.0, %v722
        %v724 = vpop.f32.mrb[0].mxu0
        %725 = vmatprep.mubr.f32.mxu0 0.0
        %726 = vmatmul.mubr.f32.gmra.mrb[0].mxu0 %v459
        %v727 = vpop.f32.mrb[0].mxu0
        %v728 = vadd.f32 0.0, %v727
        %v729 = vpop.f32.mrb[0].mxu0
        %730 = vmatprep.mubr.f32.mxu0 0.0
        %731 = vmatmul.mubr.f32.gmra.mrb[0].mxu0 %v459
        %v732 = vpop.f32.mrb[0].mxu0
        %v733 = vadd.f32 0.0, %v732
        %v734 = vpop.f32.mrb[0].mxu0
        %735 = vdwg.mxu0
        %v736 = vmul.f32 %v528, 0.0010283801
        %v737 = vmul.f32 %v533, 0.0010283801
        %v738 = vmul.f32 %v538, 0.0010283801
        %v739 = vmul.f32 %v543, 0.0010283801
        %v740 = vmul.f32 %v548, 0.0010283801
        %v741 = vmul.f32 %v553, 0.0010283801
        %v742 = vmul.f32 %v558, 0.0010283801
        %v743 = vmul.f32 %v563, 0.0010283801
        %v744 = vmul.f32 %v568, 0.0010283801
        %v745 = vmul.f32 %v573, 0.0010283801
        %v746 = vmul.f32 %v578, 0.0010283801
        %v747 = vmul.f32 %v583, 0.0010283801
        %v748 = vmul.f32 %v588, 0.0010283801
        %v749 = vmul.f32 %v593, 0.0010283801
        %v750 = vmul.f32 %v598, 0.0010283801
        %v751 = vmul.f32 %v603, 0.0010283801
        %v752 = vmul.f32 %v608, 0.0010283801
        %v753 = vmul.f32 %v613, 0.0010283801
        %v754 = vmul.f32 %v618, 0.0010283801
        %v755 = vmul.f32 %v623, 0.0010283801
        %v756 = vmul.f32 %v628, 0.0010283801
        %v757 = vmul.f32 %v633, 0.0010283801
        %v758 = vmul.f32 %v638, 0.0010283801
        %v759 = vmul.f32 %v643, 0.0010283801
        %v760 = vmul.f32 %v648, 0.0010283801
        %v761 = vmul.f32 %v653, 0.0010283801
        %v762 = vmul.f32 %v658, 0.0010283801
        %v763 = vmul.f32 %v663, 0.0010283801
        %v764 = vmul.f32 %v668, 0.0010283801
        %v765 = vmul.f32 %v673, 0.0010283801
        %v766 = vmul.f32 %v678, 0.0010283801
        %v767 = vmul.f32 %v683, 0.0010283801
        %v768 = vmul.f32 %v688, 0.0010283801
        %v769 = vmul.f32 %v693, 0.0010283801
        %v770 = vmul.f32 %v698, 0.0010283801
        %v771 = vmul.f32 %v703, 0.0010283801
        %v772 = vmul.f32 %v708, 0.0010283801
        %v773 = vmul.f32 %v713, 0.0010283801
        %v774 = vmul.f32 %v718, 0.0010283801
        %v775 = vmul.f32 %v723, 0.0010283801
        %v776 = vmul.f32 %v528, 0.007598758
        %v777 = vmul.f32 %v533, 0.007598758
        %v778 = vmul.f32 %v538, 0.007598758
        %v779 = vmul.f32 %v543, 0.007598758
        %v780 = vmul.f32 %v548, 0.007598758
        %v781 = vmul.f32 %v553, 0.007598758
        %v782 = vmul.f32 %v558, 0.007598758
        %v783 = vmul.f32 %v563, 0.007598758
        %v784 = vmul.f32 %v568, 0.007598758
        %v785 = vmul.f32 %v573, 0.007598758
        %v786 = vmul.f32 %v578, 0.007598758
        %v787 = vmul.f32 %v583, 0.007598758
        %v788 = vmul.f32 %v588, 0.007598758
        %v789 = vmul.f32 %v593, 0.007598758
        %v790 = vmul.f32 %v598, 0.007598758
        %v791 = vmul.f32 %v603, 0.007598758
        %v792 = vmul.f32 %v608, 0.007598758
        %v793 = vmul.f32 %v613, 0.007598758
        %v794 = vmul.f32 %v618, 0.007598758
        %v795 = vmul.f32 %v623, 0.007598758
        %v796 = vmul.f32 %v628, 0.007598758
        %v797 = vmul.f32 %v633, 0.007598758
        %v798 = vmul.f32 %v638, 0.007598758
        %v799 = vmul.f32 %v643, 0.007598758
        %v800 = vmul.f32 %v648, 0.007598758
        %v801 = vmul.f32 %v653, 0.007598758
        %v802 = vmul.f32 %v658, 0.007598758
        %v803 = vmul.f32 %v663, 0.007598758
        %v804 = vmul.f32 %v668, 0.007598758
        %v805 = vmul.f32 %v673, 0.007598758
        %v806 = vmul.f32 %v678, 0.007598758
        %v807 = vmul.f32 %v683, 0.007598758
        %v808 = vmul.f32 %v688, 0.007598758
        %v809 = vmul.f32 %v693, 0.007598758
        %v810 = vmul.f32 %v698, 0.007598758
        %v811 = vmul.f32 %v703, 0.007598758
        %v812 = vmul.f32 %v708, 0.007598758
        %v813 = vmul.f32 %v713, 0.007598758
        %v814 = vmul.f32 %v718, 0.007598758
        %v815 = vmul.f32 %v723, 0.007598758
        %v816 = vmul.f32 %v728, 0.007598758
        %vm858 = vcmask 1046528
        %v859 = vrot.slane %v776, 1
        %v860 = vrot.slane %v777, 1
        %v861 = vsel %vm858, %v859, %v860
        %v862 = vrot.slane %v778, 1
        %v863 = vsel %vm858, %v860, %v862
        %v864 = vrot.slane %v779, 1
        %v865 = vsel %vm858, %v862, %v864
        %v866 = vrot.slane %v780, 1
        %v867 = vsel %vm858, %v864, %v866
        %v868 = vrot.slane %v781, 1
        %v869 = vsel %vm858, %v866, %v868
        %v870 = vrot.slane %v782, 1
        %v871 = vsel %vm858, %v868, %v870
        %v872 = vrot.slane %v783, 1
        %v873 = vsel %vm858, %v870, %v872
        %v874 = vrot.slane %v784, 1
        %v875 = vsel %vm858, %v872, %v874
        %v876 = vrot.slane %v785, 1
        %v877 = vsel %vm858, %v874, %v876
        %v878 = vrot.slane %v786, 1
        %v879 = vsel %vm858, %v876, %v878
        %v880 = vrot.slane %v787, 1
        %v881 = vsel %vm858, %v878, %v880
        %v882 = vrot.slane %v788, 1
        %v883 = vsel %vm858, %v880, %v882
        %v884 = vrot.slane %v789, 1
        %v885 = vsel %vm858, %v882, %v884
        %v886 = vrot.slane %v790, 1
        %v887 = vsel %vm858, %v884, %v886
        %v888 = vrot.slane %v791, 1
        %v889 = vsel %vm858, %v886, %v888
        %v890 = vrot.slane %v792, 1
        %v891 = vsel %vm858, %v888, %v890
        %v892 = vrot.slane %v793, 1
        %v893 = vsel %vm858, %v890, %v892
        %v894 = vrot.slane %v794, 1
        %v895 = vsel %vm858, %v892, %v894
        %v896 = vrot.slane %v795, 1
        %v897 = vsel %vm858, %v894, %v896
        %v898 = vrot.slane %v796, 1
        %v899 = vsel %vm858, %v896, %v898
        %v900 = vrot.slane %v797, 1
        %v901 = vsel %vm858, %v898, %v900
        %v902 = vrot.slane %v798, 1
        %v903 = vsel %vm858, %v900, %v902
        %v904 = vrot.slane %v799, 1
        %v905 = vsel %vm858, %v902, %v904
        %v906 = vrot.slane %v800, 1
        %v907 = vsel %vm858, %v904, %v906
        %v908 = vrot.slane %v801, 1
        %v909 = vsel %vm858, %v906, %v908
        %v910 = vrot.slane %v802, 1
        %v911 = vsel %vm858, %v908, %v910
        %v912 = vrot.slane %v803, 1
        %v913 = vsel %vm858, %v910, %v912
        %v914 = vrot.slane %v804, 1
        %v915 = vsel %vm858, %v912, %v914
        %v916 = vrot.slane %v805, 1
        %v917 = vsel %vm858, %v914, %v916
        %v918 = vrot.slane %v806, 1
        %v919 = vsel %vm858, %v916, %v918
        %v920 = vrot.slane %v807, 1
        %v921 = vsel %vm858, %v918, %v920
        %v922 = vrot.slane %v808, 1
        %v923 = vsel %vm858, %v920, %v922
        %v924 = vrot.slane %v809, 1
        %v925 = vsel %vm858, %v922, %v924
        %v926 = vrot.slane %v810, 1
        %v927 = vsel %vm858, %v924, %v926
        %v928 = vrot.slane %v811, 1
        %v929 = vsel %vm858, %v926, %v928
        %v930 = vrot.slane %v812, 1
        %v931 = vsel %vm858, %v928, %v930
        %v932 = vrot.slane %v813, 1
        %v933 = vsel %vm858, %v930, %v932
        %v934 = vrot.slane %v814, 1
        %v935 = vsel %vm858, %v932, %v934
        %v936 = vrot.slane %v815, 1
        %v937 = vsel %vm858, %v934, %v936
        %v938 = vrot.slane %v816, 1
        %v939 = vsel %vm858, %v936, %v938
        %v980 = vadd.f32 %v736, %v861
        %v981 = vadd.f32 %v737, %v863
        %v982 = vadd.f32 %v738, %v865
        %v983 = vadd.f32 %v739, %v867
        %v984 = vadd.f32 %v740, %v869
        %v985 = vadd.f32 %v741, %v871
        %v986 = vadd.f32 %v742, %v873
        %v987 = vadd.f32 %v743, %v875
        %v988 = vadd.f32 %v744, %v877
        %v989 = vadd.f32 %v745, %v879
        %v990 = vadd.f32 %v746, %v881
        %v991 = vadd.f32 %v747, %v883
        %v992 = vadd.f32 %v748, %v885
        %v993 = vadd.f32 %v749, %v887
        %v994 = vadd.f32 %v750, %v889
        %v995 = vadd.f32 %v751, %v891
        %v996 = vadd.f32 %v752, %v893
        %v997 = vadd.f32 %v753, %v895
        %v998 = vadd.f32 %v754, %v897
        %v999 = vadd.f32 %v755, %v899
        %v1000 = vadd.f32 %v756, %v901
        %v1001 = vadd.f32 %v757, %v903
        %v1002 = vadd.f32 %v758, %v905
        %v1003 = vadd.f32 %v759, %v907
        %v1004 = vadd.f32 %v760, %v909
        %v1005 = vadd.f32 %v761, %v911
        %v1006 = vadd.f32 %v762, %v913
        %v1007 = vadd.f32 %v763, %v915
        %v1008 = vadd.f32 %v764, %v917
        %v1009 = vadd.f32 %v765, %v919
        %v1010 = vadd.f32 %v766, %v921
        %v1011 = vadd.f32 %v767, %v923
        %v1012 = vadd.f32 %v768, %v925
        %v1013 = vadd.f32 %v769, %v927
        %v1014 = vadd.f32 %v770, %v929
        %v1015 = vadd.f32 %v771, %v931
        %v1016 = vadd.f32 %v772, %v933
        %v1017 = vadd.f32 %v773, %v935
        %v1018 = vadd.f32 %v774, %v937
        %v1019 = vadd.f32 %v775, %v939
        %v1020 = vmul.f32 %v528, 0.036000773
        %v1021 = vmul.f32 %v533, 0.036000773
        %v1022 = vmul.f32 %v538, 0.036000773
        %v1023 = vmul.f32 %v543, 0.036000773
        %v1024 = vmul.f32 %v548, 0.036000773
        %v1025 = vmul.f32 %v553, 0.036000773
        %v1026 = vmul.f32 %v558, 0.036000773
        %v1027 = vmul.f32 %v563, 0.036000773
        %v1028 = vmul.f32 %v568, 0.036000773
        %v1029 = vmul.f32 %v573, 0.036000773
        %v1030 = vmul.f32 %v578, 0.036000773
        %v1031 = vmul.f32 %v583, 0.036000773
        %v1032 = vmul.f32 %v588, 0.036000773
        %v1033 = vmul.f32 %v593, 0.036000773
        %v1034 = vmul.f32 %v598, 0.036000773
        %v1035 = vmul.f32 %v603, 0.036000773
        %v1036 = vmul.f32 %v608, 0.036000773
        %v1037 = vmul.f32 %v613, 0.036000773
        %v1038 = vmul.f32 %v618, 0.036000773
        %v1039 = vmul.f32 %v623, 0.036000773
        %v1040 = vmul.f32 %v628, 0.036000773
        %v1041 = vmul.f32 %v633, 0.036000773
        %v1042 = vmul.f32 %v638, 0.036000773
        %v1043 = vmul.f32 %v643, 0.036000773
        %v1044 = vmul.f32 %v648, 0.036000773
        %v1045 = vmul.f32 %v653, 0.036000773
        %v1046 = vmul.f32 %v658, 0.036000773
        %v1047 = vmul.f32 %v663, 0.036000773
        %v1048 = vmul.f32 %v668, 0.036000773
        %v1049 = vmul.f32 %v673, 0.036000773
        %v1050 = vmul.f32 %v678, 0.036000773
        %v1051 = vmul.f32 %v683, 0.036000773
        %v1052 = vmul.f32 %v688, 0.036000773
        %v1053 = vmul.f32 %v693, 0.036000773
        %v1054 = vmul.f32 %v698, 0.036000773
        %v1055 = vmul.f32 %v703, 0.036000773
        %v1056 = vmul.f32 %v708, 0.036000773
        %v1057 = vmul.f32 %v713, 0.036000773
        %v1058 = vmul.f32 %v718, 0.036000773
        %v1059 = vmul.f32 %v723, 0.036000773
        %v1060 = vmul.f32 %v728, 0.036000773
        %vm1102 = vcmask 1045504
        %v1103 = vrot.slane %v1020, 2
        %v1104 = vrot.slane %v1021, 2
        %v1105 = vsel %vm1102, %v1103, %v1104
        %v1106 = vrot.slane %v1022, 2
        %v1107 = vsel %vm1102, %v1104, %v1106
        %v1108 = vrot.slane %v1023, 2
        %v1109 = vsel %vm1102, %v1106, %v1108
        %v1110 = vrot.slane %v1024, 2
        %v1111 = vsel %vm1102, %v1108, %v1110
        %v1112 = vrot.slane %v1025, 2
        %v1113 = vsel %vm1102, %v1110, %v1112
        %v1114 = vrot.slane %v1026, 2
        %v1115 = vsel %vm1102, %v1112, %v1114
        %v1116 = vrot.slane %v1027, 2
        %v1117 = vsel %vm1102, %v1114, %v1116
        %v1118 = vrot.slane %v1028, 2
        %v1119 = vsel %vm1102, %v1116, %v1118
        %v1120 = vrot.slane %v1029, 2
        %v1121 = vsel %vm1102, %v1118, %v1120
        %v1122 = vrot.slane %v1030, 2
        %v1123 = vsel %vm1102, %v1120, %v1122
        %v1124 = vrot.slane %v1031, 2
        %v1125 = vsel %vm1102, %v1122, %v1124
        %v1126 = vrot.slane %v1032, 2
        %v1127 = vsel %vm1102, %v1124, %v1126
        %v1128 = vrot.slane %v1033, 2
        %v1129 = vsel %vm1102, %v1126, %v1128
        %v1130 = vrot.slane %v1034, 2
        %v1131 = vsel %vm1102, %v1128, %v1130
        %v1132 = vrot.slane %v1035, 2
        %v1133 = vsel %vm1102, %v1130, %v1132
        %v1134 = vrot.slane %v1036, 2
        %v1135 = vsel %vm1102, %v1132, %v1134
        %v1136 = vrot.slane %v1037, 2
        %v1137 = vsel %vm1102, %v1134, %v1136
        %v1138 = vrot.slane %v1038, 2
        %v1139 = vsel %vm1102, %v1136, %v1138
        %v1140 = vrot.slane %v1039, 2
        %v1141 = vsel %vm1102, %v1138, %v1140
        %v1142 = vrot.slane %v1040, 2
        %v1143 = vsel %vm1102, %v1140, %v1142
        %v1144 = vrot.slane %v1041, 2
        %v1145 = vsel %vm1102, %v1142, %v1144
        %v1146 = vrot.slane %v1042, 2
        %v1147 = vsel %vm1102, %v1144, %v1146
        %v1148 = vrot.slane %v1043, 2
        %v1149 = vsel %vm1102, %v1146, %v1148
        %v1150 = vrot.slane %v1044, 2
        %v1151 = vsel %vm1102, %v1148, %v1150
        %v1152 = vrot.slane %v1045, 2
        %v1153 = vsel %vm1102, %v1150, %v1152
        %v1154 = vrot.slane %v1046, 2
        %v1155 = vsel %vm1102, %v1152, %v1154
        %v1156 = vrot.slane %v1047, 2
        %v1157 = vsel %vm1102, %v1154, %v1156
        %v1158 = vrot.slane %v1048, 2
        %v1159 = vsel %vm1102, %v1156, %v1158
        %v1160 = vrot.slane %v1049, 2
        %v1161 = vsel %vm1102, %v1158, %v1160
        %v1162 = vrot.slane %v1050, 2
        %v1163 = vsel %vm1102, %v1160, %v1162
        %v1164 = vrot.slane %v1051, 2
        %v1165 = vsel %vm1102, %v1162, %v1164
        %v1166 = vrot.slane %v1052, 2
        %v1167 = vsel %vm1102, %v1164, %v1166
        %v1168 = vrot.slane %v1053, 2
        %v1169 = vsel %vm1102, %v1166, %v1168
        %v1170 = vrot.slane %v1054, 2
        %v1171 = vsel %vm1102, %v1168, %v1170
        %v1172 = vrot.slane %v1055, 2
        %v1173 = vsel %vm1102, %v1170, %v1172
        %v1174 = vrot.slane %v1056, 2
        %v1175 = vsel %vm1102, %v1172, %v1174
        %v1176 = vrot.slane %v1057, 2
        %v1177 = vsel %vm1102, %v1174, %v1176
        %v1178 = vrot.slane %v1058, 2
        %v1179 = vsel %vm1102, %v1176, %v1178
        %v1180 = vrot.slane %v1059, 2
        %v1181 = vsel %vm1102, %v1178, %v1180
        %v1182 = vrot.slane %v1060, 2
        %v1183 = vsel %vm1102, %v1180, %v1182
        %v1224 = vadd.f32 %v980, %v1105
        %v1225 = vadd.f32 %v981, %v1107
        %v1226 = vadd.f32 %v982, %v1109
        %v1227 = vadd.f32 %v983, %v1111
        %v1228 = vadd.f32 %v984, %v1113
        %v1229 = vadd.f32 %v985, %v1115
        %v1230 = vadd.f32 %v986, %v1117
        %v1231 = vadd.f32 %v987, %v1119
        %v1232 = vadd.f32 %v988, %v1121
        %v1233 = vadd.f32 %v989, %v1123
        %v1234 = vadd.f32 %v990, %v1125
        %v1235 = vadd.f32 %v991, %v1127
        %v1236 = vadd.f32 %v992, %v1129
        %v1237 = vadd.f32 %v993, %v1131
        %v1238 = vadd.f32 %v994, %v1133
        %v1239 = vadd.f32 %v995, %v1135
        %v1240 = vadd.f32 %v996, %v1137
        %v1241 = vadd.f32 %v997, %v1139
        %v1242 = vadd.f32 %v998, %v1141
        %v1243 = vadd.f32 %v999, %v1143
        %v1244 = vadd.f32 %v1000, %v1145
        %v1245 = vadd.f32 %v1001, %v1147
        %v1246 = vadd.f32 %v1002, %v1149
        %v1247 = vadd.f32 %v1003, %v1151
        %v1248 = vadd.f32 %v1004, %v1153
        %v1249 = vadd.f32 %v1005, %v1155
        %v1250 = vadd.f32 %v1006, %v1157
        %v1251 = vadd.f32 %v1007, %v1159
        %v1252 = vadd.f32 %v1008, %v1161
        %v1253 = vadd.f32 %v1009, %v1163
        %v1254 = vadd.f32 %v1010, %v1165
        %v1255 = vadd.f32 %v1011, %v1167
        %v1256 = vadd.f32 %v1012, %v1169
        %v1257 = vadd.f32 %v1013, %v1171
        %v1258 = vadd.f32 %v1014, %v1173
        %v1259 = vadd.f32 %v1015, %v1175
        %v1260 = vadd.f32 %v1016, %v1177
        %v1261 = vadd.f32 %v1017, %v1179
        %v1262 = vadd.f32 %v1018, %v1181
        %v1263 = vadd.f32 %v1019, %v1183
        %v1264 = vmul.f32 %v528, 0.10936069
        %v1265 = vmul.f32 %v533, 0.10936069
        %v1266 = vmul.f32 %v538, 0.10936069
        %v1267 = vmul.f32 %v543, 0.10936069
        %v1268 = vmul.f32 %v548, 0.10936069
        %v1269 = vmul.f32 %v553, 0.10936069
        %v1270 = vmul.f32 %v558, 0.10936069
        %v1271 = vmul.f32 %v563, 0.10936069
        %v1272 = vmul.f32 %v568, 0.10936069
        %v1273 = vmul.f32 %v573, 0.10936069
        %v1274 = vmul.f32 %v578, 0.10936069
        %v1275 = vmul.f32 %v583, 0.10936069
        %v1276 = vmul.f32 %v588, 0.10936069
        %v1277 = vmul.f32 %v593, 0.10936069
        %v1278 = vmul.f32 %v598, 0.10936069
        %v1279 = vmul.f32 %v603, 0.10936069
        %v1280 = vmul.f32 %v608, 0.10936069
        %v1281 = vmul.f32 %v613, 0.10936069
        %v1282 = vmul.f32 %v618, 0.10936069
        %v1283 = vmul.f32 %v623, 0.10936069
        %v1284 = vmul.f32 %v628, 0.10936069
        %v1285 = vmul.f32 %v633, 0.10936069
        %v1286 = vmul.f32 %v638, 0.10936069
        %v1287 = vmul.f32 %v643, 0.10936069
        %v1288 = vmul.f32 %v648, 0.10936069
        %v1289 = vmul.f32 %v653, 0.10936069
        %v1290 = vmul.f32 %v658, 0.10936069
        %v1291 = vmul.f32 %v663, 0.10936069
        %v1292 = vmul.f32 %v668, 0.10936069
        %v1293 = vmul.f32 %v673, 0.10936069
        %v1294 = vmul.f32 %v678, 0.10936069
        %v1295 = vmul.f32 %v683, 0.10936069
        %v1296 = vmul.f32 %v688, 0.10936069
        %v1297 = vmul.f32 %v693, 0.10936069
        %v1298 = vmul.f32 %v698, 0.10936069
        %v1299 = vmul.f32 %v703, 0.10936069
        %v1300 = vmul.f32 %v708, 0.10936069
        %v1301 = vmul.f32 %v713, 0.10936069
        %v1302 = vmul.f32 %v718, 0.10936069
        %v1303 = vmul.f32 %v723, 0.10936069
        %v1304 = vmul.f32 %v728, 0.10936069
        %vm1346 = vcmask 1044480
        %v1347 = vrot.slane %v1264, 3
        %v1348 = vrot.slane %v1265, 3
        %v1349 = vsel %vm1346, %v1347, %v1348
        %v1350 = vrot.slane %v1266, 3
        %v1351 = vsel %vm1346, %v1348, %v1350
        %v1352 = vrot.slane %v1267, 3
        %v1353 = vsel %vm1346, %v1350, %v1352
        %v1354 = vrot.slane %v1268, 3
        %v1355 = vsel %vm1346, %v1352, %v1354
        %v1356 = vrot.slane %v1269, 3
        %v1357 = vsel %vm1346, %v1354, %v1356
        %v1358 = vrot.slane %v1270, 3
        %v1359 = vsel %vm1346, %v1356, %v1358
        %v1360 = vrot.slane %v1271, 3
        %v1361 = vsel %vm1346, %v1358, %v1360
        %v1362 = vrot.slane %v1272, 3
        %v1363 = vsel %vm1346, %v1360, %v1362
        %v1364 = vrot.slane %v1273, 3
        %v1365 = vsel %vm1346, %v1362, %v1364
        %v1366 = vrot.slane %v1274, 3
        %v1367 = vsel %vm1346, %v1364, %v1366
        %v1368 = vrot.slane %v1275, 3
        %v1369 = vsel %vm1346, %v1366, %v1368
        %v1370 = vrot.slane %v1276, 3
        %v1371 = vsel %vm1346, %v1368, %v1370
        %v1372 = vrot.slane %v1277, 3
        %v1373 = vsel %vm1346, %v1370, %v1372
        %v1374 = vrot.slane %v1278, 3
        %v1375 = vsel %vm1346, %v1372, %v1374
        %v1376 = vrot.slane %v1279, 3
        %v1377 = vsel %vm1346, %v1374, %v1376
        %v1378 = vrot.slane %v1280, 3
        %v1379 = vsel %vm1346, %v1376, %v1378
        %v1380 = vrot.slane %v1281, 3
        %v1381 = vsel %vm1346, %v1378, %v1380
        %v1382 = vrot.slane %v1282, 3
        %v1383 = vsel %vm1346, %v1380, %v1382
        %v1384 = vrot.slane %v1283, 3
        %v1385 = vsel %vm1346, %v1382, %v1384
        %v1386 = vrot.slane %v1284, 3
        %v1387 = vsel %vm1346, %v1384, %v1386
        %v1388 = vrot.slane %v1285, 3
        %v1389 = vsel %vm1346, %v1386, %v1388
        %v1390 = vrot.slane %v1286, 3
        %v1391 = vsel %vm1346, %v1388, %v1390
        %v1392 = vrot.slane %v1287, 3
        %v1393 = vsel %vm1346, %v1390, %v1392
        %v1394 = vrot.slane %v1288, 3
        %v1395 = vsel %vm1346, %v1392, %v1394
        %v1396 = vrot.slane %v1289, 3
        %v1397 = vsel %vm1346, %v1394, %v1396
        %v1398 = vrot.slane %v1290, 3
        %v1399 = vsel %vm1346, %v1396, %v1398
        %v1400 = vrot.slane %v1291, 3
        %v1401 = vsel %vm1346, %v1398, %v1400
        %v1402 = vrot.slane %v1292, 3
        %v1403 = vsel %vm1346, %v1400, %v1402
        %v1404 = vrot.slane %v1293, 3
        %v1405 = vsel %vm1346, %v1402, %v1404
        %v1406 = vrot.slane %v1294, 3
        %v1407 = vsel %vm1346, %v1404, %v1406
        %v1408 = vrot.slane %v1295, 3
        %v1409 = vsel %vm1346, %v1406, %v1408
        %v1410 = vrot.slane %v1296, 3
        %v1411 = vsel %vm1346, %v1408, %v1410
        %v1412 = vrot.slane %v1297, 3
        %v1413 = vsel %vm1346, %v1410, %v1412
        %v1414 = vrot.slane %v1298, 3
        %v1415 = vsel %vm1346, %v1412, %v1414
        %v1416 = vrot.slane %v1299, 3
        %v1417 = vsel %vm1346, %v1414, %v1416
        %v1418 = vrot.slane %v1300, 3
        %v1419 = vsel %vm1346, %v1416, %v1418
        %v1420 = vrot.slane %v1301, 3
        %v1421 = vsel %vm1346, %v1418, %v1420
        %v1422 = vrot.slane %v1302, 3
        %v1423 = vsel %vm1346, %v1420, %v1422
        %v1424 = vrot.slane %v1303, 3
        %v1425 = vsel %vm1346, %v1422, %v1424
        %v1426 = vrot.slane %v1304, 3
        %v1427 = vsel %vm1346, %v1424, %v1426
        %v1468 = vadd.f32 %v1224, %v1349
        %v1469 = vadd.f32 %v1225, %v1351
        %v1470 = vadd.f32 %v1226, %v1353
        %v1471 = vadd.f32 %v1227, %v1355
        %v1472 = vadd.f32 %v1228, %v1357
        %v1473 = vadd.f32 %v1229, %v1359
        %v1474 = vadd.f32 %v1230, %v1361
        %v1475 = vadd.f32 %v1231, %v1363
        %v1476 = vadd.f32 %v1232, %v1365
        %v1477 = vadd.f32 %v1233, %v1367
        %v1478 = vadd.f32 %v1234, %v1369
        %v1479 = vadd.f32 %v1235, %v1371
        %v1480 = vadd.f32 %v1236, %v1373
        %v1481 = vadd.f32 %v1237, %v1375
        %v1482 = vadd.f32 %v1238, %v1377
        %v1483 = vadd.f32 %v1239, %v1379
        %v1484 = vadd.f32 %v1240, %v1381
        %v1485 = vadd.f32 %v1241, %v1383
        %v1486 = vadd.f32 %v1242, %v1385
        %v1487 = vadd.f32 %v1243, %v1387
        %v1488 = vadd.f32 %v1244, %v1389
        %v1489 = vadd.f32 %v1245, %v1391
        %v1490 = vadd.f32 %v1246, %v1393
        %v1491 = vadd.f32 %v1247, %v1395
        %v1492 = vadd.f32 %v1248, %v1397
        %v1493 = vadd.f32 %v1249, %v1399
        %v1494 = vadd.f32 %v1250, %v1401
        %v1495 = vadd.f32 %v1251, %v1403
        %v1496 = vadd.f32 %v1252, %v1405
        %v1497 = vadd.f32 %v1253, %v1407
        %v1498 = vadd.f32 %v1254, %v1409
        %v1499 = vadd.f32 %v1255, %v1411
        %v1500 = vadd.f32 %v1256, %v1413
        %v1501 = vadd.f32 %v1257, %v1415
        %v1502 = vadd.f32 %v1258, %v1417
        %v1503 = vadd.f32 %v1259, %v1419
        %v1504 = vadd.f32 %v1260, %v1421
        %v1505 = vadd.f32 %v1261, %v1423
        %v1506 = vadd.f32 %v1262, %v1425
        %v1507 = vadd.f32 %v1263, %v1427
        %v1508 = vmul.f32 %v528, 0.21300554
        %v1509 = vmul.f32 %v533, 0.21300554
        %v1510 = vmul.f32 %v538, 0.21300554
        %v1511 = vmul.f32 %v543, 0.21300554
        %v1512 = vmul.f32 %v548, 0.21300554
        %v1513 = vmul.f32 %v553, 0.21300554
        %v1514 = vmul.f32 %v558, 0.21300554
        %v1515 = vmul.f32 %v563, 0.21300554
        %v1516 = vmul.f32 %v568, 0.21300554
        %v1517 = vmul.f32 %v573, 0.21300554
        %v1518 = vmul.f32 %v578, 0.21300554
        %v1519 = vmul.f32 %v583, 0.21300554
        %v1520 = vmul.f32 %v588, 0.21300554
        %v1521 = vmul.f32 %v593, 0.21300554
        %v1522 = vmul.f32 %v598, 0.21300554
        %v1523 = vmul.f32 %v603, 0.21300554
        %v1524 = vmul.f32 %v608, 0.21300554
        %v1525 = vmul.f32 %v613, 0.21300554
        %v1526 = vmul.f32 %v618, 0.21300554
        %v1527 = vmul.f32 %v623, 0.21300554
        %v1528 = vmul.f32 %v628, 0.21300554
        %v1529 = vmul.f32 %v633, 0.21300554
        %v1530 = vmul.f32 %v638, 0.21300554
        %v1531 = vmul.f32 %v643, 0.21300554
        %v1532 = vmul.f32 %v648, 0.21300554
        %v1533 = vmul.f32 %v653, 0.21300554
        %v1534 = vmul.f32 %v658, 0.21300554
        %v1535 = vmul.f32 %v663, 0.21300554
        %v1536 = vmul.f32 %v668, 0.21300554
        %v1537 = vmul.f32 %v673, 0.21300554
        %v1538 = vmul.f32 %v678, 0.21300554
        %v1539 = vmul.f32 %v683, 0.21300554
        %v1540 = vmul.f32 %v688, 0.21300554
        %v1541 = vmul.f32 %v693, 0.21300554
        %v1542 = vmul.f32 %v698, 0.21300554
        %v1543 = vmul.f32 %v703, 0.21300554
        %v1544 = vmul.f32 %v708, 0.21300554
        %v1545 = vmul.f32 %v713, 0.21300554
        %v1546 = vmul.f32 %v718, 0.21300554
        %v1547 = vmul.f32 %v723, 0.21300554
        %v1548 = vmul.f32 %v728, 0.21300554
        %vm1590 = vcmask 1043456
        %v1591 = vrot.slane %v1508, 4
        %v1592 = vrot.slane %v1509, 4
        %v1593 = vsel %vm1590, %v1591, %v1592
        %v1594 = vrot.slane %v1510, 4
        %v1595 = vsel %vm1590, %v1592, %v1594
        %v1596 = vrot.slane %v1511, 4
        %v1597 = vsel %vm1590, %v1594, %v1596
        %v1598 = vrot.slane %v1512, 4
        %v1599 = vsel %vm1590, %v1596, %v1598
        %v1600 = vrot.slane %v1513, 4
        %v1601 = vsel %vm1590, %v1598, %v1600
        %v1602 = vrot.slane %v1514, 4
        %v1603 = vsel %vm1590, %v1600, %v1602
        %v1604 = vrot.slane %v1515, 4
        %v1605 = vsel %vm1590, %v1602, %v1604
        %v1606 = vrot.slane %v1516, 4
        %v1607 = vsel %vm1590, %v1604, %v1606
        %v1608 = vrot.slane %v1517, 4
        %v1609 = vsel %vm1590, %v1606, %v1608
        %v1610 = vrot.slane %v1518, 4
        %v1611 = vsel %vm1590, %v1608, %v1610
        %v1612 = vrot.slane %v1519, 4
        %v1613 = vsel %vm1590, %v1610, %v1612
        %v1614 = vrot.slane %v1520, 4
        %v1615 = vsel %vm1590, %v1612, %v1614
        %v1616 = vrot.slane %v1521, 4
        %v1617 = vsel %vm1590, %v1614, %v1616
        %v1618 = vrot.slane %v1522, 4
        %v1619 = vsel %vm1590, %v1616, %v1618
        %v1620 = vrot.slane %v1523, 4
        %v1621 = vsel %vm1590, %v1618, %v1620
        %v1622 = vrot.slane %v1524, 4
        %v1623 = vsel %vm1590, %v1620, %v1622
        %v1624 = vrot.slane %v1525, 4
        %v1625 = vsel %vm1590, %v1622, %v1624
        %v1626 = vrot.slane %v1526, 4
        %v1627 = vsel %vm1590, %v1624, %v1626
        %v1628 = vrot.slane %v1527, 4
        %v1629 = vsel %vm1590, %v1626, %v1628
        %v1630 = vrot.slane %v1528, 4
        %v1631 = vsel %vm1590, %v1628, %v1630
        %v1632 = vrot.slane %v1529, 4
        %v1633 = vsel %vm1590, %v1630, %v1632
        %v1634 = vrot.slane %v1530, 4
        %v1635 = vsel %vm1590, %v1632, %v1634
        %v1636 = vrot.slane %v1531, 4
        %v1637 = vsel %vm1590, %v1634, %v1636
        %v1638 = vrot.slane %v1532, 4
        %v1639 = vsel %vm1590, %v1636, %v1638
        %v1640 = vrot.slane %v1533, 4
        %v1641 = vsel %vm1590, %v1638, %v1640
        %v1642 = vrot.slane %v1534, 4
        %v1643 = vsel %vm1590, %v1640, %v1642
        %v1644 = vrot.slane %v1535, 4
        %v1645 = vsel %vm1590, %v1642, %v1644
        %v1646 = vrot.slane %v1536, 4
        %v1647 = vsel %vm1590, %v1644, %v1646
        %v1648 = vrot.slane %v1537, 4
        %v1649 = vsel %vm1590, %v1646, %v1648
        %v1650 = vrot.slane %v1538, 4
        %v1651 = vsel %vm1590, %v1648, %v1650
        %v1652 = vrot.slane %v1539, 4
        %v1653 = vsel %vm1590, %v1650, %v1652
        %v1654 = vrot.slane %v1540, 4
        %v1655 = vsel %vm1590, %v1652, %v1654
        %v1656 = vrot.slane %v1541, 4
        %v1657 = vsel %vm1590, %v1654, %v1656
        %v1658 = vrot.slane %v1542, 4
        %v1659 = vsel %vm1590, %v1656, %v1658
        %v1660 = vrot.slane %v1543, 4
        %v1661 = vsel %vm1590, %v1658, %v1660
        %v1662 = vrot.slane %v1544, 4
        %v1663 = vsel %vm1590, %v1660, %v1662
        %v1664 = vrot.slane %v1545, 4
        %v1665 = vsel %vm1590, %v1662, %v1664
        %v1666 = vrot.slane %v1546, 4
        %v1667 = vsel %vm1590, %v1664, %v1666
        %v1668 = vrot.slane %v1547, 4
        %v1669 = vsel %vm1590, %v1666, %v1668
        %v1670 = vrot.slane %v1548, 4
        %v1671 = vsel %vm1590, %v1668, %v1670
        %v1712 = vadd.f32 %v1468, %v1593
        %v1713 = vadd.f32 %v1469, %v1595
        %v1714 = vadd.f32 %v1470, %v1597
        %v1715 = vadd.f32 %v1471, %v1599
        %v1716 = vadd.f32 %v1472, %v1601
        %v1717 = vadd.f32 %v1473, %v1603
        %v1718 = vadd.f32 %v1474, %v1605
        %v1719 = vadd.f32 %v1475, %v1607
        %v1720 = vadd.f32 %v1476, %v1609
        %v1721 = vadd.f32 %v1477, %v1611
        %v1722 = vadd.f32 %v1478, %v1613
        %v1723 = vadd.f32 %v1479, %v1615
        %v1724 = vadd.f32 %v1480, %v1617
        %v1725 = vadd.f32 %v1481, %v1619
        %v1726 = vadd.f32 %v1482, %v1621
        %v1727 = vadd.f32 %v1483, %v1623
        %v1728 = vadd.f32 %v1484, %v1625
        %v1729 = vadd.f32 %v1485, %v1627
        %v1730 = vadd.f32 %v1486, %v1629
        %v1731 = vadd.f32 %v1487, %v1631
        %v1732 = vadd.f32 %v1488, %v1633
        %v1733 = vadd.f32 %v1489, %v1635
        %v1734 = vadd.f32 %v1490, %v1637
        %v1735 = vadd.f32 %v1491, %v1639
        %v1736 = vadd.f32 %v1492, %v1641
        %v1737 = vadd.f32 %v1493, %v1643
        %v1738 = vadd.f32 %v1494, %v1645
        %v1739 = vadd.f32 %v1495, %v1647
        %v1740 = vadd.f32 %v1496, %v1649
        %v1741 = vadd.f32 %v1497, %v1651
        %v1742 = vadd.f32 %v1498, %v1653
        %v1743 = vadd.f32 %v1499, %v1655
        %v1744 = vadd.f32 %v1500, %v1657
        %v1745 = vadd.f32 %v1501, %v1659
        %v1746 = vadd.f32 %v1502, %v1661
        %v1747 = vadd.f32 %v1503, %v1663
        %v1748 = vadd.f32 %v1504, %v1665
        %v1749 = vadd.f32 %v1505, %v1667
        %v1750 = vadd.f32 %v1506, %v1669
        %v1751 = vadd.f32 %v1507, %v1671
        %v1752 = vmul.f32 %v528, 0.26601171
        %v1753 = vmul.f32 %v533, 0.26601171
        %v1754 = vmul.f32 %v538, 0.26601171
        %v1755 = vmul.f32 %v543, 0.26601171
        %v1756 = vmul.f32 %v548, 0.26601171
        %v1757 = vmul.f32 %v553, 0.26601171
        %v1758 = vmul.f32 %v558, 0.26601171
        %v1759 = vmul.f32 %v563, 0.26601171
        %v1760 = vmul.f32 %v568, 0.26601171
        %v1761 = vmul.f32 %v573, 0.26601171
        %v1762 = vmul.f32 %v578, 0.26601171
        %v1763 = vmul.f32 %v583, 0.26601171
        %v1764 = vmul.f32 %v588, 0.26601171
        %v1765 = vmul.f32 %v593, 0.26601171
        %v1766 = vmul.f32 %v598, 0.26601171
        %v1767 = vmul.f32 %v603, 0.26601171
        %v1768 = vmul.f32 %v608, 0.26601171
        %v1769 = vmul.f32 %v613, 0.26601171
        %v1770 = vmul.f32 %v618, 0.26601171
        %v1771 = vmul.f32 %v623, 0.26601171
        %v1772 = vmul.f32 %v628, 0.26601171
        %v1773 = vmul.f32 %v633, 0.26601171
        %v1774 = vmul.f32 %v638, 0.26601171
        %v1775 = vmul.f32 %v643, 0.26601171
        %v1776 = vmul.f32 %v648, 0.26601171
        %v1777 = vmul.f32 %v653, 0.26601171
        %v1778 = vmul.f32 %v658, 0.26601171
        %v1779 = vmul.f32 %v663, 0.26601171
        %v1780 = vmul.f32 %v668, 0.26601171
        %v1781 = vmul.f32 %v673, 0.26601171
        %v1782 = vmul.f32 %v678, 0.26601171
        %v1783 = vmul.f32 %v683, 0.26601171
        %v1784 = vmul.f32 %v688, 0.26601171
        %v1785 = vmul.f32 %v693, 0.26601171
        %v1786 = vmul.f32 %v698, 0.26601171
        %v1787 = vmul.f32 %v703, 0.26601171
        %v1788 = vmul.f32 %v708, 0.26601171
        %v1789 = vmul.f32 %v713, 0.26601171
        %v1790 = vmul.f32 %v718, 0.26601171
        %v1791 = vmul.f32 %v723, 0.26601171
        %v1792 = vmul.f32 %v728, 0.26601171
        %vm1834 = vcmask 1042432
        %v1835 = vrot.slane %v1752, 5
        %v1836 = vrot.slane %v1753, 5
        %v1837 = vsel %vm1834, %v1835, %v1836
        %v1838 = vrot.slane %v1754, 5
        %v1839 = vsel %vm1834, %v1836, %v1838
        %v1840 = vrot.slane %v1755, 5
        %v1841 = vsel %vm1834, %v1838, %v1840
        %v1842 = vrot.slane %v1756, 5
        %v1843 = vsel %vm1834, %v1840, %v1842
        %v1844 = vrot.slane %v1757, 5
        %v1845 = vsel %vm1834, %v1842, %v1844
        %v1846 = vrot.slane %v1758, 5
        %v1847 = vsel %vm1834, %v1844, %v1846
        %v1848 = vrot.slane %v1759, 5
        %v1849 = vsel %vm1834, %v1846, %v1848
        %v1850 = vrot.slane %v1760, 5
        %v1851 = vsel %vm1834, %v1848, %v1850
        %v1852 = vrot.slane %v1761, 5
        %v1853 = vsel %vm1834, %v1850, %v1852
        %v1854 = vrot.slane %v1762, 5
        %v1855 = vsel %vm1834, %v1852, %v1854
        %v1856 = vrot.slane %v1763, 5
        %v1857 = vsel %vm1834, %v1854, %v1856
        %v1858 = vrot.slane %v1764, 5
        %v1859 = vsel %vm1834, %v1856, %v1858
        %v1860 = vrot.slane %v1765, 5
        %v1861 = vsel %vm1834, %v1858, %v1860
        %v1862 = vrot.slane %v1766, 5
        %v1863 = vsel %vm1834, %v1860, %v1862
        %v1864 = vrot.slane %v1767, 5
        %v1865 = vsel %vm1834, %v1862, %v1864
        %v1866 = vrot.slane %v1768, 5
        %v1867 = vsel %vm1834, %v1864, %v1866
        %v1868 = vrot.slane %v1769, 5
        %v1869 = vsel %vm1834, %v1866, %v1868
        %v1870 = vrot.slane %v1770, 5
        %v1871 = vsel %vm1834, %v1868, %v1870
        %v1872 = vrot.slane %v1771, 5
        %v1873 = vsel %vm1834, %v1870, %v1872
        %v1874 = vrot.slane %v1772, 5
        %v1875 = vsel %vm1834, %v1872, %v1874
        %v1876 = vrot.slane %v1773, 5
        %v1877 = vsel %vm1834, %v1874, %v1876
        %v1878 = vrot.slane %v1774, 5
        %v1879 = vsel %vm1834, %v1876, %v1878
        %v1880 = vrot.slane %v1775, 5
        %v1881 = vsel %vm1834, %v1878, %v1880
        %v1882 = vrot.slane %v1776, 5
        %v1883 = vsel %vm1834, %v1880, %v1882
        %v1884 = vrot.slane %v1777, 5
        %v1885 = vsel %vm1834, %v1882, %v1884
        %v1886 = vrot.slane %v1778, 5
        %v1887 = vsel %vm1834, %v1884, %v1886
        %v1888 = vrot.slane %v1779, 5
        %v1889 = vsel %vm1834, %v1886, %v1888
        %v1890 = vrot.slane %v1780, 5
        %v1891 = vsel %vm1834, %v1888, %v1890
        %v1892 = vrot.slane %v1781, 5
        %v1893 = vsel %vm1834, %v1890, %v1892
        %v1894 = vrot.slane %v1782, 5
        %v1895 = vsel %vm1834, %v1892, %v1894
        %v1896 = vrot.slane %v1783, 5
        %v1897 = vsel %vm1834, %v1894, %v1896
        %v1898 = vrot.slane %v1784, 5
        %v1899 = vsel %vm1834, %v1896, %v1898
        %v1900 = vrot.slane %v1785, 5
        %v1901 = vsel %vm1834, %v1898, %v1900
        %v1902 = vrot.slane %v1786, 5
        %v1903 = vsel %vm1834, %v1900, %v1902
        %v1904 = vrot.slane %v1787, 5
        %v1905 = vsel %vm1834, %v1902, %v1904
        %v1906 = vrot.slane %v1788, 5
        %v1907 = vsel %vm1834, %v1904, %v1906
        %v1908 = vrot.slane %v1789, 5
        %v1909 = vsel %vm1834, %v1906, %v1908
        %v1910 = vrot.slane %v1790, 5
        %v1911 = vsel %vm1834, %v1908, %v1910
        %v1912 = vrot.slane %v1791, 5
        %v1913 = vsel %vm1834, %v1910, %v1912
        %v1914 = vrot.slane %v1792, 5
        %v1915 = vsel %vm1834, %v1912, %v1914
        %v1956 = vadd.f32 %v1712, %v1837
        %v1957 = vadd.f32 %v1713, %v1839
        %v1958 = vadd.f32 %v1714, %v1841
        %v1959 = vadd.f32 %v1715, %v1843
        %v1960 = vadd.f32 %v1716, %v1845
        %v1961 = vadd.f32 %v1717, %v1847
        %v1962 = vadd.f32 %v1718, %v1849
        %v1963 = vadd.f32 %v1719, %v1851
        %v1964 = vadd.f32 %v1720, %v1853
        %v1965 = vadd.f32 %v1721, %v1855
        %v1966 = vadd.f32 %v1722, %v1857
        %v1967 = vadd.f32 %v1723, %v1859
        %v1968 = vadd.f32 %v1724, %v1861
        %v1969 = vadd.f32 %v1725, %v1863
        %v1970 = vadd.f32 %v1726, %v1865
        %v1971 = vadd.f32 %v1727, %v1867
        %v1972 = vadd.f32 %v1728, %v1869
        %v1973 = vadd.f32 %v1729, %v1871
        %v1974 = vadd.f32 %v1730, %v1873
        %v1975 = vadd.f32 %v1731, %v1875
        %v1976 = vadd.f32 %v1732, %v1877
        %v1977 = vadd.f32 %v1733, %v1879
        %v1978 = vadd.f32 %v1734, %v1881
        %v1979 = vadd.f32 %v1735, %v1883
        %v1980 = vadd.f32 %v1736, %v1885
        %v1981 = vadd.f32 %v1737, %v1887
        %v1982 = vadd.f32 %v1738, %v1889
        %v1983 = vadd.f32 %v1739, %v1891
        %v1984 = vadd.f32 %v1740, %v1893
        %v1985 = vadd.f32 %v1741, %v1895
        %v1986 = vadd.f32 %v1742, %v1897
        %v1987 = vadd.f32 %v1743, %v1899
        %v1988 = vadd.f32 %v1744, %v1901
        %v1989 = vadd.f32 %v1745, %v1903
        %v1990 = vadd.f32 %v1746, %v1905
        %v1991 = vadd.f32 %v1747, %v1907
        %v1992 = vadd.f32 %v1748, %v1909
        %v1993 = vadd.f32 %v1749, %v1911
        %v1994 = vadd.f32 %v1750, %v1913
        %v1995 = vadd.f32 %v1751, %v1915
        %vm1996 = vcmask 1041408
        %v1997 = vrot.slane %v1508, 6
        %v1998 = vrot.slane %v1509, 6
        %v1999 = vsel %vm1996, %v1997, %v1998
        %v2000 = vrot.slane %v1510, 6
        %v2001 = vsel %vm1996, %v1998, %v2000
        %v2002 = vrot.slane %v1511, 6
        %v2003 = vsel %vm1996, %v2000, %v2002
        %v2004 = vrot.slane %v1512, 6
        %v2005 = vsel %vm1996, %v2002, %v2004
        %v2006 = vrot.slane %v1513, 6
        %v2007 = vsel %vm1996, %v2004, %v2006
        %v2008 = vrot.slane %v1514, 6
        %v2009 = vsel %vm1996, %v2006, %v2008
        %v2010 = vrot.slane %v1515, 6
        %v2011 = vsel %vm1996, %v2008, %v2010
        %v2012 = vrot.slane %v1516, 6
        %v2013 = vsel %vm1996, %v2010, %v2012
        %v2014 = vrot.slane %v1517, 6
        %v2015 = vsel %vm1996, %v2012, %v2014
        %v2016 = vrot.slane %v1518, 6
        %v2017 = vsel %vm1996, %v2014, %v2016
        %v2018 = vrot.slane %v1519, 6
        %v2019 = vsel %vm1996, %v2016, %v2018
        %v2020 = vrot.slane %v1520, 6
        %v2021 = vsel %vm1996, %v2018, %v2020
        %v2022 = vrot.slane %v1521, 6
        %v2023 = vsel %vm1996, %v2020, %v2022
        %v2024 = vrot.slane %v1522, 6
        %v2025 = vsel %vm1996, %v2022, %v2024
        %v2026 = vrot.slane %v1523, 6
        %v2027 = vsel %vm1996, %v2024, %v2026
        %v2028 = vrot.slane %v1524, 6
        %v2029 = vsel %vm1996, %v2026, %v2028
        %v2030 = vrot.slane %v1525, 6
        %v2031 = vsel %vm1996, %v2028, %v2030
        %v2032 = vrot.slane %v1526, 6
        %v2033 = vsel %vm1996, %v2030, %v2032
        %v2034 = vrot.slane %v1527, 6
        %v2035 = vsel %vm1996, %v2032, %v2034
        %v2036 = vrot.slane %v1528, 6
        %v2037 = vsel %vm1996, %v2034, %v2036
        %v2038 = vrot.slane %v1529, 6
        %v2039 = vsel %vm1996, %v2036, %v2038
        %v2040 = vrot.slane %v1530, 6
        %v2041 = vsel %vm1996, %v2038, %v2040
        %v2042 = vrot.slane %v1531, 6
        %v2043 = vsel %vm1996, %v2040, %v2042
        %v2044 = vrot.slane %v1532, 6
        %v2045 = vsel %vm1996, %v2042, %v2044
        %v2046 = vrot.slane %v1533, 6
        %v2047 = vsel %vm1996, %v2044, %v2046
        %v2048 = vrot.slane %v1534, 6
        %v2049 = vsel %vm1996, %v2046, %v2048
        %v2050 = vrot.slane %v1535, 6
        %v2051 = vsel %vm1996, %v2048, %v2050
        %v2052 = vrot.slane %v1536, 6
        %v2053 = vsel %vm1996, %v2050, %v2052
        %v2054 = vrot.slane %v1537, 6
        %v2055 = vsel %vm1996, %v2052, %v2054
        %v2056 = vrot.slane %v1538, 6
        %v2057 = vsel %vm1996, %v2054, %v2056
        %v2058 = vrot.slane %v1539, 6
        %v2059 = vsel %vm1996, %v2056, %v2058
        %v2060 = vrot.slane %v1540, 6
        %v2061 = vsel %vm1996, %v2058, %v2060
        %v2062 = vrot.slane %v1541, 6
        %v2063 = vsel %vm1996, %v2060, %v2062
        %v2064 = vrot.slane %v1542, 6
        %v2065 = vsel %vm1996, %v2062, %v2064
        %v2066 = vrot.slane %v1543, 6
        %v2067 = vsel %vm1996, %v2064, %v2066
        %v2068 = vrot.slane %v1544, 6
        %v2069 = vsel %vm1996, %v2066, %v2068
        %v2070 = vrot.slane %v1545, 6
        %v2071 = vsel %vm1996, %v2068, %v2070
        %v2072 = vrot.slane %v1546, 6
        %v2073 = vsel %vm1996, %v2070, %v2072
        %v2074 = vrot.slane %v1547, 6
        %v2075 = vsel %vm1996, %v2072, %v2074
        %v2076 = vrot.slane %v1548, 6
        %v2077 = vsel %vm1996, %v2074, %v2076
        %v2118 = vadd.f32 %v1956, %v1999
        %v2119 = vadd.f32 %v1957, %v2001
        %v2120 = vadd.f32 %v1958, %v2003
        %v2121 = vadd.f32 %v1959, %v2005
        %v2122 = vadd.f32 %v1960, %v2007
        %v2123 = vadd.f32 %v1961, %v2009
        %v2124 = vadd.f32 %v1962, %v2011
        %v2125 = vadd.f32 %v1963, %v2013
        %v2126 = vadd.f32 %v1964, %v2015
        %v2127 = vadd.f32 %v1965, %v2017
        %v2128 = vadd.f32 %v1966, %v2019
        %v2129 = vadd.f32 %v1967, %v2021
        %v2130 = vadd.f32 %v1968, %v2023
        %v2131 = vadd.f32 %v1969, %v2025
        %v2132 = vadd.f32 %v1970, %v2027
        %v2133 = vadd.f32 %v1971, %v2029
        %v2134 = vadd.f32 %v1972, %v2031
        %v2135 = vadd.f32 %v1973, %v2033
        %v2136 = vadd.f32 %v1974, %v2035
        %v2137 = vadd.f32 %v1975, %v2037
        %v2138 = vadd.f32 %v1976, %v2039
        %v2139 = vadd.f32 %v1977, %v2041
        %v2140 = vadd.f32 %v1978, %v2043
        %v2141 = vadd.f32 %v1979, %v2045
        %v2142 = vadd.f32 %v1980, %v2047
        %v2143 = vadd.f32 %v1981, %v2049
        %v2144 = vadd.f32 %v1982, %v2051
        %v2145 = vadd.f32 %v1983, %v2053
        %v2146 = vadd.f32 %v1984, %v2055
        %v2147 = vadd.f32 %v1985, %v2057
        %v2148 = vadd.f32 %v1986, %v2059
        %v2149 = vadd.f32 %v1987, %v2061
        %v2150 = vadd.f32 %v1988, %v2063
        %v2151 = vadd.f32 %v1989, %v2065
        %v2152 = vadd.f32 %v1990, %v2067
        %v2153 = vadd.f32 %v1991, %v2069
        %v2154 = vadd.f32 %v1992, %v2071
        %v2155 = vadd.f32 %v1993, %v2073
        %v2156 = vadd.f32 %v1994, %v2075
        %v2157 = vadd.f32 %v1995, %v2077
        %vm2158 = vcmask 1040384
        %v2159 = vrot.slane %v1264, 7
        %v2160 = vrot.slane %v1265, 7
        %v2161 = vsel %vm2158, %v2159, %v2160
        %v2162 = vrot.slane %v1266, 7
        %v2163 = vsel %vm2158, %v2160, %v2162
        %v2164 = vrot.slane %v1267, 7
        %v2165 = vsel %vm2158, %v2162, %v2164
        %v2166 = vrot.slane %v1268, 7
        %v2167 = vsel %vm2158, %v2164, %v2166
        %v2168 = vrot.slane %v1269, 7
        %v2169 = vsel %vm2158, %v2166, %v2168
        %v2170 = vrot.slane %v1270, 7
        %v2171 = vsel %vm2158, %v2168, %v2170
        %v2172 = vrot.slane %v1271, 7
        %v2173 = vsel %vm2158, %v2170, %v2172
        %v2174 = vrot.slane %v1272, 7
        %v2175 = vsel %vm2158, %v2172, %v2174
        %v2176 = vrot.slane %v1273, 7
        %v2177 = vsel %vm2158, %v2174, %v2176
        %v2178 = vrot.slane %v1274, 7
        %v2179 = vsel %vm2158, %v2176, %v2178
        %v2180 = vrot.slane %v1275, 7
        %v2181 = vsel %vm2158, %v2178, %v2180
        %v2182 = vrot.slane %v1276, 7
        %v2183 = vsel %vm2158, %v2180, %v2182
        %v2184 = vrot.slane %v1277, 7
        %v2185 = vsel %vm2158, %v2182, %v2184
        %v2186 = vrot.slane %v1278, 7
        %v2187 = vsel %vm2158, %v2184, %v2186
        %v2188 = vrot.slane %v1279, 7
        %v2189 = vsel %vm2158, %v2186, %v2188
        %v2190 = vrot.slane %v1280, 7
        %v2191 = vsel %vm2158, %v2188, %v2190
        %v2192 = vrot.slane %v1281, 7
        %v2193 = vsel %vm2158, %v2190, %v2192
        %v2194 = vrot.slane %v1282, 7
        %v2195 = vsel %vm2158, %v2192, %v2194
        %v2196 = vrot.slane %v1283, 7
        %v2197 = vsel %vm2158, %v2194, %v2196
        %v2198 = vrot.slane %v1284, 7
        %v2199 = vsel %vm2158, %v2196, %v2198
        %v2200 = vrot.slane %v1285, 7
        %v2201 = vsel %vm2158, %v2198, %v2200
        %v2202 = vrot.slane %v1286, 7
        %v2203 = vsel %vm2158, %v2200, %v2202
        %v2204 = vrot.slane %v1287, 7
        %v2205 = vsel %vm2158, %v2202, %v2204
        %v2206 = vrot.slane %v1288, 7
        %v2207 = vsel %vm2158, %v2204, %v2206
        %v2208 = vrot.slane %v1289, 7
        %v2209 = vsel %vm2158, %v2206, %v2208
        %v2210 = vrot.slane %v1290, 7
        %v2211 = vsel %vm2158, %v2208, %v2210
        %v2212 = vrot.slane %v1291, 7
        %v2213 = vsel %vm2158, %v2210, %v2212
        %v2214 = vrot.slane %v1292, 7
        %v2215 = vsel %vm2158, %v2212, %v2214
        %v2216 = vrot.slane %v1293, 7
        %v2217 = vsel %vm2158, %v2214, %v2216
        %v2218 = vrot.slane %v1294, 7
        %v2219 = vsel %vm2158, %v2216, %v2218
        %v2220 = vrot.slane %v1295, 7
        %v2221 = vsel %vm2158, %v2218, %v2220
        %v2222 = vrot.slane %v1296, 7
        %v2223 = vsel %vm2158, %v2220, %v2222
        %v2224 = vrot.slane %v1297, 7
        %v2225 = vsel %vm2158, %v2222, %v2224
        %v2226 = vrot.slane %v1298, 7
        %v2227 = vsel %vm2158, %v2224, %v2226
        %v2228 = vrot.slane %v1299, 7
        %v2229 = vsel %vm2158, %v2226, %v2228
        %v2230 = vrot.slane %v1300, 7
        %v2231 = vsel %vm2158, %v2228, %v2230
        %v2232 = vrot.slane %v1301, 7
        %v2233 = vsel %vm2158, %v2230, %v2232
        %v2234 = vrot.slane %v1302, 7
        %v2235 = vsel %vm2158, %v2232, %v2234
        %v2236 = vrot.slane %v1303, 7
        %v2237 = vsel %vm2158, %v2234, %v2236
        %v2238 = vrot.slane %v1304, 7
        %v2239 = vsel %vm2158, %v2236, %v2238
        %v2280 = vadd.f32 %v2118, %v2161
        %v2281 = vadd.f32 %v2119, %v2163
        %v2282 = vadd.f32 %v2120, %v2165
        %v2283 = vadd.f32 %v2121, %v2167
        %v2284 = vadd.f32 %v2122, %v2169
        %v2285 = vadd.f32 %v2123, %v2171
        %v2286 = vadd.f32 %v2124, %v2173
        %v2287 = vadd.f32 %v2125, %v2175
        %v2288 = vadd.f32 %v2126, %v2177
        %v2289 = vadd.f32 %v2127, %v2179
        %v2290 = vadd.f32 %v2128, %v2181
        %v2291 = vadd.f32 %v2129, %v2183
        %v2292 = vadd.f32 %v2130, %v2185
        %v2293 = vadd.f32 %v2131, %v2187
        %v2294 = vadd.f32 %v2132, %v2189
        %v2295 = vadd.f32 %v2133, %v2191
        %v2296 = vadd.f32 %v2134, %v2193
        %v2297 = vadd.f32 %v2135, %v2195
        %v2298 = vadd.f32 %v2136, %v2197
        %v2299 = vadd.f32 %v2137, %v2199
        %v2300 = vadd.f32 %v2138, %v2201
        %v2301 = vadd.f32 %v2139, %v2203
        %v2302 = vadd.f32 %v2140, %v2205
        %v2303 = vadd.f32 %v2141, %v2207
        %v2304 = vadd.f32 %v2142, %v2209
        %v2305 = vadd.f32 %v2143, %v2211
        %v2306 = vadd.f32 %v2144, %v2213
        %v2307 = vadd.f32 %v2145, %v2215
        %v2308 = vadd.f32 %v2146, %v2217
        %v2309 = vadd.f32 %v2147, %v2219
        %v2310 = vadd.f32 %v2148, %v2221
        %v2311 = vadd.f32 %v2149, %v2223
        %v2312 = vadd.f32 %v2150, %v2225
        %v2313 = vadd.f32 %v2151, %v2227
        %v2314 = vadd.f32 %v2152, %v2229
        %v2315 = vadd.f32 %v2153, %v2231
        %v2316 = vadd.f32 %v2154, %v2233
        %v2317 = vadd.f32 %v2155, %v2235
        %v2318 = vadd.f32 %v2156, %v2237
        %v2319 = vadd.f32 %v2157, %v2239
        %v2320 = vadd.f32 %v2280, %v1021
        %v2321 = vadd.f32 %v2281, %v1022
        %v2322 = vadd.f32 %v2282, %v1023
        %v2323 = vadd.f32 %v2283, %v1024
        %v2324 = vadd.f32 %v2284, %v1025
        %v2325 = vadd.f32 %v2285, %v1026
        %v2326 = vadd.f32 %v2286, %v1027
        %v2327 = vadd.f32 %v2287, %v1028
        %v2328 = vadd.f32 %v2288, %v1029
        %v2329 = vadd.f32 %v2289, %v1030
        %v2330 = vadd.f32 %v2290, %v1031
        %v2331 = vadd.f32 %v2291, %v1032
        %v2332 = vadd.f32 %v2292, %v1033
        %v2333 = vadd.f32 %v2293, %v1034
        %v2334 = vadd.f32 %v2294, %v1035
        %v2335 = vadd.f32 %v2295, %v1036
        %v2336 = vadd.f32 %v2296, %v1037
        %v2337 = vadd.f32 %v2297, %v1038
        %v2338 = vadd.f32 %v2298, %v1039
        %v2339 = vadd.f32 %v2299, %v1040
        %v2340 = vadd.f32 %v2300, %v1041
        %v2341 = vadd.f32 %v2301, %v1042
        %v2342 = vadd.f32 %v2302, %v1043
        %v2343 = vadd.f32 %v2303, %v1044
        %v2344 = vadd.f32 %v2304, %v1045
        %v2345 = vadd.f32 %v2305, %v1046
        %v2346 = vadd.f32 %v2306, %v1047
        %v2347 = vadd.f32 %v2307, %v1048
        %v2348 = vadd.f32 %v2308, %v1049
        %v2349 = vadd.f32 %v2309, %v1050
        %v2350 = vadd.f32 %v2310, %v1051
        %v2351 = vadd.f32 %v2311, %v1052
        %v2352 = vadd.f32 %v2312, %v1053
        %v2353 = vadd.f32 %v2313, %v1054
        %v2354 = vadd.f32 %v2314, %v1055
        %v2355 = vadd.f32 %v2315, %v1056
        %v2356 = vadd.f32 %v2316, %v1057
        %v2357 = vadd.f32 %v2317, %v1058
        %v2358 = vadd.f32 %v2318, %v1059
        %v2359 = vadd.f32 %v2319, %v1060
        %v2360 = vmul.f32 %v733, 0.007598758
        %v2362 = vrot.slane %v2360, 1
        %v2363 = vsel %vm858, %v938, %v2362
        %v2365 = vadd.f32 %v2320, %v863
        %v2366 = vadd.f32 %v2321, %v865
        %v2367 = vadd.f32 %v2322, %v867
        %v2368 = vadd.f32 %v2323, %v869
        %v2369 = vadd.f32 %v2324, %v871
        %v2370 = vadd.f32 %v2325, %v873
        %v2371 = vadd.f32 %v2326, %v875
        %v2372 = vadd.f32 %v2327, %v877
        %v2373 = vadd.f32 %v2328, %v879
        %v2374 = vadd.f32 %v2329, %v881
        %v2375 = vadd.f32 %v2330, %v883
        %v2376 = vadd.f32 %v2331, %v885
        %v2377 = vadd.f32 %v2332, %v887
        %v2378 = vadd.f32 %v2333, %v889
        %v2379 = vadd.f32 %v2334, %v891
        %v2380 = vadd.f32 %v2335, %v893
        %v2381 = vadd.f32 %v2336, %v895
        %v2382 = vadd.f32 %v2337, %v897
        %v2383 = vadd.f32 %v2338, %v899
        %v2384 = vadd.f32 %v2339, %v901
        %v2385 = vadd.f32 %v2340, %v903
        %v2386 = vadd.f32 %v2341, %v905
        %v2387 = vadd.f32 %v2342, %v907
        %v2388 = vadd.f32 %v2343, %v909
        %v2389 = vadd.f32 %v2344, %v911
        %v2390 = vadd.f32 %v2345, %v913
        %v2391 = vadd.f32 %v2346, %v915
        %v2392 = vadd.f32 %v2347, %v917
        %v2393 = vadd.f32 %v2348, %v919
        %v2394 = vadd.f32 %v2349, %v921
        %v2395 = vadd.f32 %v2350, %v923
        %v2396 = vadd.f32 %v2351, %v925
        %v2397 = vadd.f32 %v2352, %v927
        %v2398 = vadd.f32 %v2353, %v929
        %v2399 = vadd.f32 %v2354, %v931
        %v2400 = vadd.f32 %v2355, %v933
        %v2401 = vadd.f32 %v2356, %v935
        %v2402 = vadd.f32 %v2357, %v937
        %v2403 = vadd.f32 %v2358, %v939
        %v2404 = vadd.f32 %v2359, %v2363
        %v2405 = vmul.f32 %v728, 0.0010283801
        %v2406 = vmul.f32 %v733, 0.0010283801
        %v2448 = vrot.slane %v737, 2
        %v2449 = vrot.slane %v738, 2
        %v2450 = vsel %vm1102, %v2448, %v2449
        %v2451 = vrot.slane %v739, 2
        %v2452 = vsel %vm1102, %v2449, %v2451
        %v2453 = vrot.slane %v740, 2
        %v2454 = vsel %vm1102, %v2451, %v2453
        %v2455 = vrot.slane %v741, 2
        %v2456 = vsel %vm1102, %v2453, %v2455
        %v2457 = vrot.slane %v742, 2
        %v2458 = vsel %vm1102, %v2455, %v2457
        %v2459 = vrot.slane %v743, 2
        %v2460 = vsel %vm1102, %v2457, %v2459
        %v2461 = vrot.slane %v744, 2
        %v2462 = vsel %vm1102, %v2459, %v2461
        %v2463 = vrot.slane %v745, 2
        %v2464 = vsel %vm1102, %v2461, %v2463
        %v2465 = vrot.slane %v746, 2
        %v2466 = vsel %vm1102, %v2463, %v2465
        %v2467 = vrot.slane %v747, 2
        %v2468 = vsel %vm1102, %v2465, %v2467
        %v2469 = vrot.slane %v748, 2
        %v2470 = vsel %vm1102, %v2467, %v2469
        %v2471 = vrot.slane %v749, 2
        %v2472 = vsel %vm1102, %v2469, %v2471
        %v2473 = vrot.slane %v750, 2
        %v2474 = vsel %vm1102, %v2471, %v2473
        %v2475 = vrot.slane %v751, 2
        %v2476 = vsel %vm1102, %v2473, %v2475
        %v2477 = vrot.slane %v752, 2
        %v2478 = vsel %vm1102, %v2475, %v2477
        %v2479 = vrot.slane %v753, 2
        %v2480 = vsel %vm1102, %v2477, %v2479
        %v2481 = vrot.slane %v754, 2
        %v2482 = vsel %vm1102, %v2479, %v2481
        %v2483 = vrot.slane %v755, 2
        %v2484 = vsel %vm1102, %v2481, %v2483
        %v2485 = vrot.slane %v756, 2
        %v2486 = vsel %vm1102, %v2483, %v2485
        %v2487 = vrot.slane %v757, 2
        %v2488 = vsel %vm1102, %v2485, %v2487
        %v2489 = vrot.slane %v758, 2
        %v2490 = vsel %vm1102, %v2487, %v2489
        %v2491 = vrot.slane %v759, 2
        %v2492 = vsel %vm1102, %v2489, %v2491
        %v2493 = vrot.slane %v760, 2
        %v2494 = vsel %vm1102, %v2491, %v2493
        %v2495 = vrot.slane %v761, 2
        %v2496 = vsel %vm1102, %v2493, %v2495
        %v2497 = vrot.slane %v762, 2
        %v2498 = vsel %vm1102, %v2495, %v2497
        %v2499 = vrot.slane %v763, 2
        %v2500 = vsel %vm1102, %v2497, %v2499
        %v2501 = vrot.slane %v764, 2
        %v2502 = vsel %vm1102, %v2499, %v2501
        %v2503 = vrot.slane %v765, 2
        %v2504 = vsel %vm1102, %v2501, %v2503
        %v2505 = vrot.slane %v766, 2
        %v2506 = vsel %vm1102, %v2503, %v2505
        %v2507 = vrot.slane %v767, 2
        %v2508 = vsel %vm1102, %v2505, %v2507
        %v2509 = vrot.slane %v768, 2
        %v2510 = vsel %vm1102, %v2507, %v2509
        %v2511 = vrot.slane %v769, 2
        %v2512 = vsel %vm1102, %v2509, %v2511
        %v2513 = vrot.slane %v770, 2
        %v2514 = vsel %vm1102, %v2511, %v2513
        %v2515 = vrot.slane %v771, 2
        %v2516 = vsel %vm1102, %v2513, %v2515
        %v2517 = vrot.slane %v772, 2
        %v2518 = vsel %vm1102, %v2515, %v2517
        %v2519 = vrot.slane %v773, 2
        %v2520 = vsel %vm1102, %v2517, %v2519
        %v2521 = vrot.slane %v774, 2
        %v2522 = vsel %vm1102, %v2519, %v2521
        %v2523 = vrot.slane %v775, 2
        %v2524 = vsel %vm1102, %v2521, %v2523
        %v2525 = vrot.slane %v2405, 2
        %v2526 = vsel %vm1102, %v2523, %v2525
        %v2527 = vrot.slane %v2406, 2
        %v2528 = vsel %vm1102, %v2525, %v2527
        %v2569 = vadd.f32 %v2365, %v2450
        %v2570 = vadd.f32 %v2366, %v2452
        %v2571 = vadd.f32 %v2367, %v2454
        %v2572 = vadd.f32 %v2368, %v2456
        %v2573 = vadd.f32 %v2369, %v2458
        %v2574 = vadd.f32 %v2370, %v2460
        %v2575 = vadd.f32 %v2371, %v2462
        %v2576 = vadd.f32 %v2372, %v2464
        %v2577 = vadd.f32 %v2373, %v2466
        %v2578 = vadd.f32 %v2374, %v2468
        %v2579 = vadd.f32 %v2375, %v2470
        %v2580 = vadd.f32 %v2376, %v2472
        %v2581 = vadd.f32 %v2377, %v2474
        %v2582 = vadd.f32 %v2378, %v2476
        %v2583 = vadd.f32 %v2379, %v2478
        %v2584 = vadd.f32 %v2380, %v2480
        %v2585 = vadd.f32 %v2381, %v2482
        %v2586 = vadd.f32 %v2382, %v2484
        %v2587 = vadd.f32 %v2383, %v2486
        %v2588 = vadd.f32 %v2384, %v2488
        %v2589 = vadd.f32 %v2385, %v2490
        %v2590 = vadd.f32 %v2386, %v2492
        %v2591 = vadd.f32 %v2387, %v2494
        %v2592 = vadd.f32 %v2388, %v2496
        %v2593 = vadd.f32 %v2389, %v2498
        %v2594 = vadd.f32 %v2390, %v2500
        %v2595 = vadd.f32 %v2391, %v2502
        %v2596 = vadd.f32 %v2392, %v2504
        %v2597 = vadd.f32 %v2393, %v2506
        %v2598 = vadd.f32 %v2394, %v2508
        %v2599 = vadd.f32 %v2395, %v2510
        %v2600 = vadd.f32 %v2396, %v2512
        %v2601 = vadd.f32 %v2397, %v2514
        %v2602 = vadd.f32 %v2398, %v2516
        %v2603 = vadd.f32 %v2399, %v2518
        %v2604 = vadd.f32 %v2400, %v2520
        %v2605 = vadd.f32 %v2401, %v2522
        %v2606 = vadd.f32 %v2402, %v2524
        %v2607 = vadd.f32 %v2403, %v2526
        %v2608 = vadd.f32 %v2404, %v2528
        %v2609 = vmul.f32 %v2569, %v2569
        %v2610 = vmul.f32 %v2570, %v2570
        %v2611 = vmul.f32 %v2571, %v2571
        %v2612 = vmul.f32 %v2572, %v2572
        %v2613 = vmul.f32 %v2573, %v2573
        %v2614 = vmul.f32 %v2574, %v2574
        %v2615 = vmul.f32 %v2575, %v2575
        %v2616 = vmul.f32 %v2576, %v2576
        %v2617 = vmul.f32 %v2577, %v2577
        %v2618 = vmul.f32 %v2578, %v2578
        %v2619 = vmul.f32 %v2579, %v2579
        %v2620 = vmul.f32 %v2580, %v2580
        %v2621 = vmul.f32 %v2581, %v2581
        %v2622 = vmul.f32 %v2582, %v2582
        %v2623 = vmul.f32 %v2583, %v2583
        %v2624 = vmul.f32 %v2584, %v2584
        %v2625 = vmul.f32 %v2569, %v2577
        %v2626 = vmul.f32 %v2570, %v2578
        %v2627 = vmul.f32 %v2571, %v2579
        %v2628 = vmul.f32 %v2572, %v2580
        %v2629 = vmul.f32 %v2573, %v2581
        %v2630 = vmul.f32 %v2574, %v2582
        %v2631 = vmul.f32 %v2575, %v2583
        %v2632 = vmul.f32 %v2576, %v2584
        %v2633 = vsub.f32 %v2585, %v2609
        %v2634 = vsub.f32 %v2586, %v2610
        %v2635 = vsub.f32 %v2587, %v2611
        %v2636 = vsub.f32 %v2588, %v2612
        %v2637 = vsub.f32 %v2589, %v2613
        %v2638 = vsub.f32 %v2590, %v2614
        %v2639 = vsub.f32 %v2591, %v2615
        %v2640 = vsub.f32 %v2592, %v2616
        %v2641 = vsub.f32 %v2593, %v2617
        %v2642 = vsub.f32 %v2594, %v2618
        %v2643 = vsub.f32 %v2595, %v2619
        %v2644 = vsub.f32 %v2596, %v2620
        %v2645 = vsub.f32 %v2597, %v2621
        %v2646 = vsub.f32 %v2598, %v2622
        %v2647 = vsub.f32 %v2599, %v2623
        %v2648 = vsub.f32 %v2600, %v2624
        %v2649 = vsub.f32 %v2601, %v2625
        %v2650 = vsub.f32 %v2602, %v2626
        %v2651 = vsub.f32 %v2603, %v2627
        %v2652 = vsub.f32 %v2604, %v2628
        %v2653 = vsub.f32 %v2605, %v2629
        %v2654 = vsub.f32 %v2606, %v2630
        %v2655 = vsub.f32 %v2607, %v2631
        %v2656 = vsub.f32 %v2608, %v2632
        %v2657 = vmul.f32 %v2649, 2.0
        %v2658 = vmul.f32 %v2650, 2.0
        %v2659 = vmul.f32 %v2651, 2.0
        %v2660 = vmul.f32 %v2652, 2.0
        %v2661 = vmul.f32 %v2653, 2.0
        %v2662 = vmul.f32 %v2654, 2.0
        %v2663 = vmul.f32 %v2655, 2.0
        %v2664 = vmul.f32 %v2656, 2.0
        %v2665 = vadd.f32 %v2657, 0.0009
        %v2666 = vadd.f32 %v2658, 0.0009
        %v2667 = vadd.f32 %v2659, 0.0009
        %v2668 = vadd.f32 %v2660, 0.0009
        %v2669 = vadd.f32 %v2661, 0.0009
        %v2670 = vadd.f32 %v2662, 0.0009
        %v2671 = vadd.f32 %v2663, 0.0009
        %v2672 = vadd.f32 %v2664, 0.0009
        %v2673 = vmul.f32 %v2625, 2.0
        %v2674 = vmul.f32 %v2626, 2.0
        %v2675 = vmul.f32 %v2627, 2.0
        %v2676 = vmul.f32 %v2628, 2.0
        %v2677 = vmul.f32 %v2629, 2.0
        %v2678 = vmul.f32 %v2630, 2.0
        %v2679 = vmul.f32 %v2631, 2.0
        %v2680 = vmul.f32 %v2632, 2.0
        %v2681 = vadd.f32 %v2673, 0.0001
        %v2682 = vadd.f32 %v2674, 0.0001
        %v2683 = vadd.f32 %v2675, 0.0001
        %v2684 = vadd.f32 %v2676, 0.0001
        %v2685 = vadd.f32 %v2677, 0.0001
        %v2686 = vadd.f32 %v2678, 0.0001
        %v2687 = vadd.f32 %v2679, 0.0001
        %v2688 = vadd.f32 %v2680, 0.0001
        %v2689 = vmul.f32 %v2665, %v2681
        %v2690 = vmul.f32 %v2666, %v2682
        %v2691 = vmul.f32 %v2667, %v2683
        %v2692 = vmul.f32 %v2668, %v2684
        %v2693 = vmul.f32 %v2669, %v2685
        %v2694 = vmul.f32 %v2670, %v2686
        %v2695 = vmul.f32 %v2671, %v2687
        %v2696 = vmul.f32 %v2672, %v2688
        %v2697 = vadd.f32 %v2633, %v2641
        %v2698 = vadd.f32 %v2634, %v2642
        %v2699 = vadd.f32 %v2635, %v2643
        %v2700 = vadd.f32 %v2636, %v2644
        %v2701 = vadd.f32 %v2637, %v2645
        %v2702 = vadd.f32 %v2638, %v2646
        %v2703 = vadd.f32 %v2639, %v2647
        %v2704 = vadd.f32 %v2640, %v2648
        %v2705 = vadd.f32 %v2697, 0.0009
        %v2706 = vadd.f32 %v2698, 0.0009
        %v2707 = vadd.f32 %v2699, 0.0009
        %v2708 = vadd.f32 %v2700, 0.0009
        %v2709 = vadd.f32 %v2701, 0.0009
        %v2710 = vadd.f32 %v2702, 0.0009
        %v2711 = vadd.f32 %v2703, 0.0009
        %v2712 = vadd.f32 %v2704, 0.0009
        %v2713 = vadd.f32 %v2609, %v2617
        %v2714 = vadd.f32 %v2610, %v2618
        %v2715 = vadd.f32 %v2611, %v2619
        %v2716 = vadd.f32 %v2612, %v2620
        %v2717 = vadd.f32 %v2613, %v2621
        %v2718 = vadd.f32 %v2614, %v2622
        %v2719 = vadd.f32 %v2615, %v2623
        %v2720 = vadd.f32 %v2616, %v2624
        %v2721 = vadd.f32 %v2713, 0.0001
        %v2722 = vadd.f32 %v2714, 0.0001
        %v2723 = vadd.f32 %v2715, 0.0001
        %v2724 = vadd.f32 %v2716, 0.0001
        %v2725 = vadd.f32 %v2717, 0.0001
        %v2726 = vadd.f32 %v2718, 0.0001
        %v2727 = vadd.f32 %v2719, 0.0001
        %v2728 = vadd.f32 %v2720, 0.0001
        %v2729 = vmul.f32 %v2705, %v2721
        %v2730 = vmul.f32 %v2706, %v2722
        %v2731 = vmul.f32 %v2707, %v2723
        %v2732 = vmul.f32 %v2708, %v2724
        %v2733 = vmul.f32 %v2709, %v2725
        %v2734 = vmul.f32 %v2710, %v2726
        %v2735 = vmul.f32 %v2711, %v2727
        %v2736 = vmul.f32 %v2712, %v2728
        %v2737 = vrcp.pop %v2729
        %v2738 = vrcp.pop %v2730
        %v2739 = vrcp.pop %v2731
        %v2740 = vrcp.pop %v2732
        %v2741 = vrcp.pop %v2733
        %v2742 = vrcp.pop %v2734
        %v2743 = vrcp.pop %v2735
        %v2744 = vrcp.pop %v2736
        %v2745 = vmul.f32 %v2689, %v2737
        %v2746 = vmul.f32 %v2690, %v2738
        %v2747 = vmul.f32 %v2691, %v2739
        %v2748 = vmul.f32 %v2692, %v2740
        %v2749 = vmul.f32 %v2693, %v2741
        %v2750 = vmul.f32 %v2694, %v2742
        %v2751 = vmul.f32 %v2695, %v2743
        %v2752 = vmul.f32 %v2696, %v2744
        %v2753 = vld [vmem:[%s3] sm:$0xff]
        %v2754 = vld [vmem:[%s3 + $0x8] sm:$0xff]
        %v2755 = vld [vmem:[%s3 + $0x10] sm:$0xff]
        %v2756 = vld [vmem:[%s3 + $0x18] sm:$0xff]
        %v2757 = vld [vmem:[%s3 + $0x20] sm:$0xff]
        %v2758 = vld [vmem:[%s3 + $0x28] sm:$0xff]
        %v2759 = vld [vmem:[%s3 + $0x30] sm:$0xff]
        %v2760 = vld [vmem:[%s3 + $0x38] sm:$0xff]
        %vm2761 = vcmp.gt.f32.partialorder %v2753, 0.0
        %vm2762 = vcmp.gt.f32.partialorder %v2754, 0.0
        %vm2763 = vcmp.gt.f32.partialorder %v2755, 0.0
        %vm2764 = vcmp.gt.f32.partialorder %v2756, 0.0
        %vm2765 = vcmp.gt.f32.partialorder %v2757, 0.0
        %vm2766 = vcmp.gt.f32.partialorder %v2758, 0.0
        %vm2767 = vcmp.gt.f32.partialorder %v2759, 0.0
        %vm2768 = vcmp.gt.f32.partialorder %v2760, 0.0
        %v2769 = vsel %vm2761, 1, 0
        %v2770 = vsel %vm2762, 1, 0
        %v2771 = vsel %vm2763, 1, 0
        %v2772 = vsel %vm2764, 1, 0
        %v2773 = vsel %vm2765, 1, 0
        %v2774 = vsel %vm2766, 1, 0
        %v2775 = vsel %vm2767, 1, 0
        %v2776 = vsel %vm2768, 1, 0
        %2777 = vset.pattern.permute.xlu0 0
        %2778 = vperm.xlu0 %2777, %v2769
        %v2779 = vpop.permute.xlu0 %2778
        %2780 = vset.pattern.permute.xlu0 0
        %2781 = vperm.xlu0 %2780, %v2770
        %v2782 = vpop.permute.xlu0 %2781
        %2783 = vset.pattern.permute.xlu0 0
        %2784 = vperm.xlu0 %2783, %v2771
        %v2785 = vpop.permute.xlu0 %2784
        %2786 = vset.pattern.permute.xlu0 0
        %2787 = vperm.xlu0 %2786, %v2772
        %v2788 = vpop.permute.xlu0 %2787
        %2789 = vset.pattern.permute.xlu0 0
        %2790 = vperm.xlu0 %2789, %v2773
        %v2791 = vpop.permute.xlu0 %2790
        %2792 = vset.pattern.permute.xlu0 0
        %2793 = vperm.xlu0 %2792, %v2774
        %v2794 = vpop.permute.xlu0 %2793
        %2795 = vset.pattern.permute.xlu0 0
        %2796 = vperm.xlu0 %2795, %v2775
        %v2797 = vpop.permute.xlu0 %2796
        %2798 = vset.pattern.permute.xlu0 0
        %2799 = vperm.xlu0 %2798, %v2776
        %v2800 = vpop.permute.xlu0 %2799
        %vm2801 = vcmp.eq.s32.totalorder %v2779, 1
        %vm2802 = vcmp.eq.s32.totalorder %v2782, 1
        %vm2803 = vcmp.eq.s32.totalorder %v2785, 1
        %vm2804 = vcmp.eq.s32.totalorder %v2788, 1
        %vm2805 = vcmp.eq.s32.totalorder %v2791, 1
        %vm2806 = vcmp.eq.s32.totalorder %v2794, 1
        %vm2807 = vcmp.eq.s32.totalorder %v2797, 1
        %vm2808 = vcmp.eq.s32.totalorder %v2800, 1
        %v2809 = vsel %vm2801, %v2745, 0.0
        %v2810 = vsel %vm2802, %v2746, 0.0
        %v2811 = vsel %vm2803, %v2747, 0.0
        %v2812 = vsel %vm2804, %v2748, 0.0
        %v2813 = vsel %vm2805, %v2749, 0.0
        %v2814 = vsel %vm2806, %v2750, 0.0
        %v2815 = vsel %vm2807, %v2751, 0.0
        %v2816 = vsel %vm2808, %v2752, 0.0
        %vm2817 = vcmask 48128
        %v2818 = vsel %vm2817, %v2809, 0.0
        %v2819 = vsel %vm2817, %v2810, 0.0
        %v2820 = vadd.f32 %v2818, %v2819
        %v2821 = vsel %vm2817, %v2811, 0.0
        %v2822 = vadd.f32 %v2820, %v2821
        %v2823 = vsel %vm2817, %v2812, 0.0
        %v2824 = vadd.f32 %v2822, %v2823
        %v2825 = vsel %vm2817, %v2813, 0.0
        %v2826 = vadd.f32 %v2824, %v2825
        %v2827 = vsel %vm2817, %v2814, 0.0
        %v2828 = vadd.f32 %v2826, %v2827
        %v2829 = vsel %vm2817, %v2815, 0.0
        %v2830 = vadd.f32 %v2828, %v2829
        %v2831 = vsel %vm2817, %v2816, 0.0
        %v2832 = vadd.f32 %v2830, %v2831
        %2833 = vadd.xlane.f32.xlu0 %v2832
        %v2834 = vpop.xlane.xlu0 %2833
        %v2835 = vrot.slane %v2834, 4
        %v2836 = vadd.f32 %v2834, %v2835
        %v2837 = vrot.slane %v2836, 2
        %v2838 = vadd.f32 %v2836, %v2837
        %v2839 = vrot.slane %v2838, 1
        %v2840 = vadd.f32 %v2838, %v2839
        %s2841 = vtos %v2840
        %v2842 = vstv %s2841
        %vm2843 = vcmask 0
        %2844 = vst.msk [vmem:[%s254] sm:$0x1] %vm2843, %v2842
        %p2845 = scmp.lt.s32.totalorder %s17, 1
        %s2846 = scalar_select %p2845, %s17, 1
        %s2847 = scalar_lea.vmem %s5, %s2846
        // Predicated region
        $region45: #{ssim_pallas.1} parent=39 // pred_check
          %p2848 = pneg %p150
        $region46: #{ssim_pallas.1} parent=39 // pred_check_branch
          %2850 = sbr.rel (%p2848) target = $region48
        $region47: #{ssim_pallas.1} parent=39 // pred_region
          _
        $region48: #{ssim_pallas.1} parent=39 // pred_fallthru
          _
      $region40: #{ssim_pallas.1} parent=5 // pred_fallthru
        _
      %p2851 = scmp.le.s32.totalorder 2, %s12
      // Predicated region
      $region49: #{ssim_pallas.1} parent=5 // pred_check
        %p2852 = pneg %p2851
      $region50: #{ssim_pallas.1} parent=5 // pred_check_branch
        %2854 = sbr.rel (%p2852) target = $region52
      $region51: #{ssim_pallas.1} parent=5 // pred_region
        %s2855 = ssub.s32 %s12, 2
        // Predicated region
        $region53: #{ssim_pallas.1} parent=51 // pred_check
          %p2856 = pneg %p156
        $region54: #{ssim_pallas.1} parent=51 // pred_check_branch
          %2858 = sbr.rel (%p2856) target = $region56
        $region55: #{ssim_pallas.1} parent=51 // pred_region
          %p2859 = scmp.lt.s32.totalorder %s18, 1
          %s2860 = scalar_select %p2859, %s18, 1
          %s2861 = scalar_lea.vmem %s5, %s2860
        $region56: #{ssim_pallas.1} parent=51 // pred_fallthru
          _
      $region52: #{ssim_pallas.1} parent=5 // pred_fallthru
        _
    $region6: #{ssim_pallas.1} parent=1 // loop_footer
      %s16 = sadd.s32 1, %s12
    $region7: #{ssim_pallas.1} parent=1 // loop_footer_branch
      %11 = sbr.rel target = $region3
    $region8: #{ssim_pallas.1} parent=1 // loop_exit
      _
    %2862 = vsyncpa [#allocation3], 1
    %s2863 = scalar_lea.sflag [#allocation3], 1
    %2864 = vsyncpa %s2863, 1

</llo_original>
